<compile_context>
chip_gen: v7x
topology: tpu7x:2x2x1
jax: 0.10.0
libtpu: 0.0.40
codegen_flags: <defaults>
</compile_context>

<pallas_src>
import functools

import jax
import jax.numpy as jnp
from jax import lax
from jax.experimental import pallas as pl
from jax.experimental.pallas import tpu as pltpu


def _aspp_kernel(x_ref, w_ref, bias_ref, o_ref, xpad_ref, *,
                 H, W, CIN, CINP, TH, dilations, pad, rebuild_each_step):
    # x_ref:    (1, CIN, H*W)            f32, whole image, spatial on lanes
    # w_ref:    (NB*COUT, NB*9*CINP)     bf16, block-diagonal, BN-scale folded
    # bias_ref: (NB*COUT, 1)             f32, folded conv-bias + BN bias
    # o_ref:    (1, NB*COUT, TH*W)       one lane-dense row tile
    # xpad_ref: (CINP, H*W + 2*pad)      bf16 scratch (zero halo, padded CIN)
    HW = H * W
    THW = TH * W
    win = THW + 2 * pad

    def build_halo():
        # Zero only the halo columns and the padded-channel rows (not the
        # whole scratch), then copy the interior; the f32 -> bf16 cast rides
        # on this copy (a DMA cannot change dtype, so it stays a vreg copy).
        if CINP > CIN:
            xpad_ref[CIN:, :] = jnp.zeros((CINP - CIN, HW + 2 * pad),
                                          xpad_ref.dtype)
        xpad_ref[:CIN, :pad] = jnp.zeros((CIN, pad), xpad_ref.dtype)
        xpad_ref[:CIN, pad + HW:] = jnp.zeros((CIN, pad), xpad_ref.dtype)
        xpad_ref[:CIN, pad:pad + HW] = x_ref[0].astype(xpad_ref.dtype)

    if rebuild_each_step:
        build_halo()                       # t axis is "parallel" in this mode
    else:
        @pl.when(pl.program_id(1) == 0)    # once per batch; t axis "arbitrary"
        def _():
            build_halo()

    # One lane-aligned dynamic read of this tile's rows plus halo.
    if TH == H:                            # single tile -> fully static window
        start = 0
    else:
        start = pl.multiple_of(pl.program_id(1) * THW, 128)
    window = xpad_ref[:, pl.ds(start, win)]              # (CINP, win) bf16

    # Hoisted, de-duplicated W-boundary wrap masks (one per distinct dx).
    col = lax.broadcasted_iota(jnp.int32, (1, THW), 1) % W
    masks = {}
    for d in dilations:
        for dx in (-d, d):
            if dx != 0 and dx not in masks:
                ok = jnp.logical_and(col + dx >= 0, col + dx < W)
                masks[dx] = ok.astype(window.dtype)      # bf16 0/1

    # Build all 36 im2col taps once and do a single fused matmul.
    taps = []
    for d in dilations:
        for ky in range(3):
            dy = (ky - 1) * d
            for kx in range(3):
                dx = (kx - 1) * d
                s = pad + dy * W + dx                    # static lane offset
                tap = window[:, s:s + THW]               # (CINP, THW) bf16
                if dx != 0:
                    tap = tap * masks[dx]                # kill row-wrap
                taps.append(tap)
    cols = jnp.concatenate(taps, axis=0)                 # (NB*9*CINP, THW)

    y = jnp.dot(w_ref[...], cols, preferred_element_type=jnp.float32)
    y = jnp.maximum(y + bias_ref[...], 0.0)              # bias + ReLU epilogue
    o_ref[0] = y.astype(o_ref.dtype)


def _pick_tile_rows(H, W):
    # Largest row tile with THW % 128 == 0 and THW <= 2048 lanes; if even the
    # smallest valid tile exceeds 2048 take that one.
    best = None
    for th in range(1, H + 1):
        if H % th:
            continue
        thw = th * W
        if thw % 128:
            continue
        if thw <= 2048:
            best = th
        else:
            if best is None:
                best = th
            break
    if best is None:
        # TODO(synk): for shapes with no 128-multiple divisor, pad H*W in the
        # wrapper instead of falling back to a whole-image block.
        best = H
    return best


@functools.partial(jax.jit, static_argnames=("dilations", "out_dtype"))
def aspp_pallas(x_nchw, w_oihw, scale, bias, dilations, out_dtype=jnp.float32):
    """ASPP forward.

    x_nchw: (N, CIN, H, W) f32;  w_oihw: (NB, COUT, CIN, 3, 3) f32
    scale, bias: (NB, COUT) f32 (conv bias + eval-mode BN already folded)
    returns (N, NB*COUT, H, W) out_dtype (NCHW, matching torch.cat(dim=1)).
    """
    N, CIN, H, W = x_nchw.shape
    NB, COUT = w_oihw.shape[0], w_oihw.shape[1]
    NBCOUT = NB * COUT
    d_max = max(dilations)
    TH = _pick_tile_rows(H, W)
    T = H // TH
    HW, THW = H * W, TH * W
    # Halo (covers +-d_max rows and cols in the flattened layout), rounded up
    # to a lane multiple so all scratch stores are aligned.
    pad = -(-(d_max * (W + 1)) // 128) * 128
    CINP = -(-CIN // 16) * 16              # pad CIN to the bf16 sublane tile

    # NCHW -> (N, CIN, H*W): metadata-only reshape; stays f32 (no extra HBM
    # cast pass — the bf16 cast happens inside the kernel on the halo copy).
    x_flat = x_nchw.reshape(N, CIN, HW)

    # Fold BN scale into the conv weights (f32, before the bf16 cast), pad
    # CIN -> CINP with zero columns, and build ONE block-diagonal weight so
    # all four branches are a single matmul.  K order = (branch, ky, kx, cin),
    # matching the kernel's tap concatenation order.
    w_s = w_oihw * scale[:, :, None, None, None]          # (NB,COUT,CIN,3,3)
    wk = jnp.transpose(w_s, (0, 1, 3, 4, 2))              # (NB,COUT,3,3,CIN)
    wk = jnp.pad(wk, ((0, 0), (0, 0), (0, 0), (0, 0), (0, CINP - CIN)))
    wk = wk.reshape(NB, COUT, 9 * CINP)
    wfull = jnp.einsum("nok,nm->nomk", wk, jnp.eye(NB, dtype=wk.dtype))
    wfull = wfull.reshape(NBCOUT, NB * 9 * CINP).astype(jnp.bfloat16)

    bias2 = bias.reshape(NBCOUT, 1).astype(jnp.float32)

    # If N == 1 keep the t axis parallel (feeds both v7x TensorCores) and pay
    # a per-step halo rebuild; otherwise build once per batch (t "arbitrary").
    rebuild_each_step = (N == 1 and T > 1)
    t_sem = "parallel" if rebuild_each_step else "arbitrary"

    kernel = functools.partial(_aspp_kernel, H=H, W=W, CIN=CIN, CINP=CINP,
                               TH=TH, dilations=tuple(dilations), pad=pad,
                               rebuild_each_step=rebuild_each_step)

    # Explicit VMEM budget (double-buffered in/out blocks + scratch + im2col
    # working set), generous headroom, capped at 48 MiB for v7x's 64 MiB/TC.
    osz = jnp.dtype(out_dtype).itemsize
    est = (2 * CIN * HW * 4                       # f32 input block, 2 bufs
           + CINP * (HW + 2 * pad) * 2            # bf16 halo scratch
           + 2 * NBCOUT * THW * osz               # output block, 2 bufs
           + 3 * NB * 9 * CINP * THW * 2          # im2col working set
           + 2 * NBCOUT * NB * 9 * CINP * 2       # weights
           + (2 << 20))
    vmem_limit = int(min(48 * 2 ** 20, max(2 * est, 16 * 2 ** 20)))

    out_flat = pl.pallas_call(
        kernel,
        out_shape=jax.ShapeDtypeStruct((N, NBCOUT, HW), out_dtype),
        grid_spec=pltpu.PrefetchScalarGridSpec(
            num_scalar_prefetch=0,
            grid=(N, T),
            in_specs=[
                # whole image per batch (constant block across t -> fetched
                # once per n; next-batch prefetch overlaps compute)
                pl.BlockSpec((1, CIN, HW), lambda n, t: (n, 0, 0)),
                pl.BlockSpec((NBCOUT, NB * 9 * CINP), lambda n, t: (0, 0)),
                pl.BlockSpec((NBCOUT, 1), lambda n, t: (0, 0)),
            ],
            out_specs=pl.BlockSpec((1, NBCOUT, THW), lambda n, t: (n, 0, t)),
            scratch_shapes=[pltpu.VMEM((CINP, HW + 2 * pad), jnp.bfloat16)],
        ),
        compiler_params=pltpu.CompilerParams(
            dimension_semantics=("parallel", t_sem),
            vmem_limit_bytes=vmem_limit),
    )(x_flat, wfull, bias2)

    # (N, NB*COUT, H*W) -> (N, NB*COUT, H, W): contiguous metadata reshape.
    return out_flat.reshape(N, NBCOUT, H, W)


def aspp_reference(x_nchw, w_oihw, scale, bias, dilations):
    """Pure-JAX reference with the same bf16 rounding (f32 accumulate)."""
    x = x_nchw.astype(jnp.bfloat16).astype(jnp.float32)
    outs = []
    for b, d in enumerate(dilations):
        w = (w_oihw[b] * scale[b][:, None, None, None])
        w = w.astype(jnp.bfloat16).astype(jnp.float32)
        y = lax.conv_general_dilated(
            x, w,
            window_strides=(1, 1),
            padding=[(d, d), (d, d)],
            rhs_dilation=(d, d),
            dimension_numbers=("NCHW", "OIHW", "NCHW"),
            preferred_element_type=jnp.float32,
        )
        y = y + bias[b][None, :, None, None]
        outs.append(jnp.maximum(y, 0.0))
    return jnp.concatenate(outs, axis=1)


if __name__ == "__main__":
    # Small shapes consistent with the module: NCHW input (2, 8, 16, 16),
    # reduction=4 -> each branch outputs 2 channels, concat -> 8 channels.
    N, IN_CH, H, W = 2, 8, 16, 16
    REDUCTION = 4
    COUT = IN_CH // REDUCTION
    DILATIONS = (1, 2, 3, 4)
    EPS = 1e-5

    key = jax.random.PRNGKey(0)
    keys = jax.random.split(key, 7)

    x = jax.random.normal(keys[0], (N, IN_CH, H, W), jnp.float32)
    w_oihw = 0.1 * jax.random.normal(keys[1], (4, COUT, IN_CH, 3, 3),
                                     jnp.float32)
    conv_b = 0.1 * jax.random.normal(keys[2], (4, COUT), jnp.float32)
    bn_gamma = 1.0 + 0.1 * jax.random.normal(keys[3], (4, COUT), jnp.float32)
    bn_beta = 0.1 * jax.random.normal(keys[4], (4, COUT), jnp.float32)
    bn_mean = 0.1 * jax.random.normal(keys[5], (4, COUT), jnp.float32)
    bn_var = jnp.abs(jax.random.normal(keys[6], (4, COUT), jnp.float32)) + 0.5

    # Fold conv bias + eval-mode BatchNorm into per-channel scale & bias.
    # TODO(synk): training-mode BatchNorm (batch statistics) is not implemented.
    scale = bn_gamma / jnp.sqrt(bn_var + EPS)          # (4, COUT)
    bias = (conv_b - bn_mean) * scale + bn_beta        # (4, COUT)

    out = aspp_pallas(x, w_oihw, scale, bias, dilations=DILATIONS)
    out = jax.block_until_ready(out)

    ref = aspp_reference(x, w_oihw, scale, bias, DILATIONS)
    ref = jax.block_until_ready(ref)

    assert out.shape == (N, 4 * COUT, H, W)
    err = float(jnp.max(jnp.abs(out - ref)))
    if err < 1e-3:
        print("KERNEL_OK")
    else:
        raise SystemExit(f"mismatch, max abs err = {err}")
</pallas_src>

<mosaic_0001>
module attributes {stable_mosaic.version = 11 : i64} {
  func.func @_aspp_kernel(%arg0: i32, %arg1: i32, %arg2: memref<1x8x256xf32, #tpu.memory_space<vmem>>, %arg3: memref<8x576xbf16, #tpu.memory_space<vmem>>, %arg4: memref<8x1xf32, #tpu.memory_space<vmem>>, %arg5: memref<1x8x256xf32, #tpu.memory_space<vmem>>, %arg6: memref<16x512xbf16, #tpu.memory_space<vmem>>) attributes {dimension_semantics = [#tpu.dimension_semantics<parallel>, #tpu.dimension_semantics<arbitrary>], iteration_bounds = array<i64: 2, 1>, scalar_prefetch = 0 : i64, scratch_operands = 1 : i64, tpu.core_type = #tpu.core_type<tc>, window_params = [{transform_indices = @transform_0, window_bounds = array<i64: 1, 8, 256>}, {pipeline_mode = #tpu.pipeline_mode<synchronous>, transform_indices = @transform_1, window_bounds = array<i64: 8, 576>}, {pipeline_mode = #tpu.pipeline_mode<synchronous>, transform_indices = @transform_2, window_bounds = array<i64: 8, 1>}, {transform_indices = @transform_3, window_bounds = array<i64: 1, 8, 256>}]} {
    %c0_i32 = arith.constant 0 : i32
    %0 = arith.cmpi eq, %arg1, %c0_i32 : i32
    %1 = arith.extui %0 : i1 to i32
    %c0_i32_0 = arith.constant 0 : i32
    %2 = arith.cmpi ne, %1, %c0_i32_0 : i32
    scf.if %2 {
      %cst_39 = arith.constant 0.000000e+00 : bf16
      %215 = vector.broadcast %cst_39 : bf16 to vector<8x512xbf16>
      %c8 = arith.constant 8 : index
      %c0_40 = arith.constant 0 : index
      %216 = vector.load %arg6[%c8, %c0_40] : memref<16x512xbf16, #tpu.memory_space<vmem>>, vector<8x512xbf16>
      tpu.vector_store %arg6[%c8, %c0_40], %215 {strides = array<i32>} : memref<16x512xbf16, #tpu.memory_space<vmem>>, vector<8x512xbf16>,
      %cst_41 = arith.constant 0.000000e+00 : bf16
      %217 = vector.broadcast %cst_41 : bf16 to vector<8x128xbf16>
      %c0_42 = arith.constant 0 : index
      %c0_43 = arith.constant 0 : index
      %218 = vector.load %arg6[%c0_42, %c0_43] : memref<16x512xbf16, #tpu.memory_space<vmem>>, vector<8x128xbf16>
      tpu.vector_store %arg6[%c0_42, %c0_43], %217 {strides = array<i32>} : memref<16x512xbf16, #tpu.memory_space<vmem>>, vector<8x128xbf16>,
      %cst_44 = arith.constant 0.000000e+00 : bf16
      %219 = vector.broadcast %cst_44 : bf16 to vector<8x128xbf16>
      %c0_45 = arith.constant 0 : index
      %c384 = arith.constant 384 : index
      %220 = vector.load %arg6[%c0_45, %c384] : memref<16x512xbf16, #tpu.memory_space<vmem>>, vector<8x128xbf16>
      tpu.vector_store %arg6[%c0_45, %c384], %219 {strides = array<i32>} : memref<16x512xbf16, #tpu.memory_space<vmem>>, vector<8x128xbf16>,
      %c0_46 = arith.constant 0 : index
      %c0_47 = arith.constant 0 : index
      %c0_48 = arith.constant 0 : index
      %221 = vector.load %arg2[%c0_46, %c0_47, %c0_48] : memref<1x8x256xf32, #tpu.memory_space<vmem>>, vector<1x8x256xf32>
      %222 = vector.shape_cast %221 : vector<1x8x256xf32> to vector<8x256xf32>
      %223 = arith.truncf %222 : vector<8x256xf32> to vector<8x256xbf16>
      %c0_49 = arith.constant 0 : index
      %c128 = arith.constant 128 : index
      %224 = vector.load %arg6[%c0_49, %c128] : memref<16x512xbf16, #tpu.memory_space<vmem>>, vector<8x256xbf16>
      tpu.vector_store %arg6[%c0_49, %c128], %223 {strides = array<i32>} : memref<16x512xbf16, #tpu.memory_space<vmem>>, vector<8x256xbf16>,
    } else {
    }
    %c0 = arith.constant 0 : index
    %c0_1 = arith.constant 0 : index
    %3 = vector.load %arg6[%c0, %c0_1] : memref<16x512xbf16, #tpu.memory_space<vmem>>, vector<16x512xbf16>
    %4 = tpu.iota {dimensions = array<i32: 1>} : vector<1x256xi32>
    %c16_i32 = arith.constant 16 : i32
    %c0_i32_2 = arith.constant 0 : i32
    %5 = arith.cmpi eq, %c16_i32, %c0_i32_2 : i32
    %c1_i32 = arith.constant 1 : i32
    %6 = arith.select %5, %c1_i32, %c16_i32 : i32
    %7 = vector.broadcast %6 : i32 to vector<1x256xi32>
    %8 = arith.remsi %4, %7 : vector<1x256xi32>
    %c0_i32_3 = arith.constant 0 : i32
    %9 = vector.broadcast %c0_i32_3 : i32 to vector<1x256xi32>
    %10 = arith.cmpi ne, %8, %9 : vector<1x256xi32>
    %c0_i32_4 = arith.constant 0 : i32
    %11 = vector.broadcast %c0_i32_4 : i32 to vector<1x256xi32>
    %12 = arith.cmpi slt, %8, %11 : vector<1x256xi32>
    %c0_i32_5 = arith.constant 0 : i32
    %13 = arith.cmpi slt, %6, %c0_i32_5 : i32
    %14 = vector.broadcast %13 : i1 to vector<1x256xi1>
    %15 = vector.broadcast %14 : vector<1x256xi1> to vector<1x256xi1>
    %16 = arith.xori %12, %15 : vector<1x256xi1>
    %17 = arith.andi %16, %10 : vector<1x256xi1>
    %18 = vector.broadcast %6 : i32 to vector<1x256xi32>
    %19 = arith.addi %8, %18 : vector<1x256xi32>
    %20 = arith.select %17, %19, %8 : vector<1x256xi1>, vector<1x256xi32>
    %c-1_i32 = arith.constant -1 : i32
    %21 = vector.broadcast %c-1_i32 : i32 to vector<1x256xi32>
    %22 = arith.addi %20, %21 : vector<1x256xi32>
    %c0_i32_6 = arith.constant 0 : i32
    %23 = vector.broadcast %c0_i32_6 : i32 to vector<1x256xi32>
    %24 = arith.cmpi sge, %22, %23 : vector<1x256xi32>
    %c-1_i32_7 = arith.constant -1 : i32
    %25 = vector.broadcast %c-1_i32_7 : i32 to vector<1x256xi32>
    %26 = arith.addi %20, %25 : vector<1x256xi32>
    %c16_i32_8 = arith.constant 16 : i32
    %27 = vector.broadcast %c16_i32_8 : i32 to vector<1x256xi32>
    %28 = arith.cmpi slt, %26, %27 : vector<1x256xi32>
    %29 = arith.andi %24, %28 : vector<1x256xi1>
    %30 = arith.extui %29 : vector<1x256xi1> to vector<1x256xi32>
    %31 = arith.sitofp %30 : vector<1x256xi32> to vector<1x256xf32>
    %32 = arith.truncf %31 : vector<1x256xf32> to vector<1x256xbf16>
    %c1_i32_9 = arith.constant 1 : i32
    %33 = vector.broadcast %c1_i32_9 : i32 to vector<1x256xi32>
    %34 = arith.addi %20, %33 : vector<1x256xi32>
    %c0_i32_10 = arith.constant 0 : i32
    %35 = vector.broadcast %c0_i32_10 : i32 to vector<1x256xi32>
    %36 = arith.cmpi sge, %34, %35 : vector<1x256xi32>
    %c1_i32_11 = arith.constant 1 : i32
    %37 = vector.broadcast %c1_i32_11 : i32 to vector<1x256xi32>
    %38 = arith.addi %20, %37 : vector<1x256xi32>
    %c16_i32_12 = arith.constant 16 : i32
    %39 = vector.broadcast %c16_i32_12 : i32 to vector<1x256xi32>
    %40 = arith.cmpi slt, %38, %39 : vector<1x256xi32>
    %41 = arith.andi %36, %40 : vector<1x256xi1>
    %42 = arith.extui %41 : vector<1x256xi1> to vector<1x256xi32>
    %43 = arith.sitofp %42 : vector<1x256xi32> to vector<1x256xf32>
    %44 = arith.truncf %43 : vector<1x256xf32> to vector<1x256xbf16>
    %c-2_i32 = arith.constant -2 : i32
    %45 = vector.broadcast %c-2_i32 : i32 to vector<1x256xi32>
    %46 = arith.addi %20, %45 : vector<1x256xi32>
    %c0_i32_13 = arith.constant 0 : i32
    %47 = vector.broadcast %c0_i32_13 : i32 to vector<1x256xi32>
    %48 = arith.cmpi sge, %46, %47 : vector<1x256xi32>
    %c-2_i32_14 = arith.constant -2 : i32
    %49 = vector.broadcast %c-2_i32_14 : i32 to vector<1x256xi32>
    %50 = arith.addi %20, %49 : vector<1x256xi32>
    %c16_i32_15 = arith.constant 16 : i32
    %51 = vector.broadcast %c16_i32_15 : i32 to vector<1x256xi32>
    %52 = arith.cmpi slt, %50, %51 : vector<1x256xi32>
    %53 = arith.andi %48, %52 : vector<1x256xi1>
    %54 = arith.extui %53 : vector<1x256xi1> to vector<1x256xi32>
    %55 = arith.sitofp %54 : vector<1x256xi32> to vector<1x256xf32>
    %56 = arith.truncf %55 : vector<1x256xf32> to vector<1x256xbf16>
    %c2_i32 = arith.constant 2 : i32
    %57 = vector.broadcast %c2_i32 : i32 to vector<1x256xi32>
    %58 = arith.addi %20, %57 : vector<1x256xi32>
    %c0_i32_16 = arith.constant 0 : i32
    %59 = vector.broadcast %c0_i32_16 : i32 to vector<1x256xi32>
    %60 = arith.cmpi sge, %58, %59 : vector<1x256xi32>
    %c2_i32_17 = arith.constant 2 : i32
    %61 = vector.broadcast %c2_i32_17 : i32 to vector<1x256xi32>
    %62 = arith.addi %20, %61 : vector<1x256xi32>
    %c16_i32_18 = arith.constant 16 : i32
    %63 = vector.broadcast %c16_i32_18 : i32 to vector<1x256xi32>
    %64 = arith.cmpi slt, %62, %63 : vector<1x256xi32>
    %65 = arith.andi %60, %64 : vector<1x256xi1>
    %66 = arith.extui %65 : vector<1x256xi1> to vector<1x256xi32>
    %67 = arith.sitofp %66 : vector<1x256xi32> to vector<1x256xf32>
    %68 = arith.truncf %67 : vector<1x256xf32> to vector<1x256xbf16>
    %c-3_i32 = arith.constant -3 : i32
    %69 = vector.broadcast %c-3_i32 : i32 to vector<1x256xi32>
    %70 = arith.addi %20, %69 : vector<1x256xi32>
    %c0_i32_19 = arith.constant 0 : i32
    %71 = vector.broadcast %c0_i32_19 : i32 to vector<1x256xi32>
    %72 = arith.cmpi sge, %70, %71 : vector<1x256xi32>
    %c-3_i32_20 = arith.constant -3 : i32
    %73 = vector.broadcast %c-3_i32_20 : i32 to vector<1x256xi32>
    %74 = arith.addi %20, %73 : vector<1x256xi32>
    %c16_i32_21 = arith.constant 16 : i32
    %75 = vector.broadcast %c16_i32_21 : i32 to vector<1x256xi32>
    %76 = arith.cmpi slt, %74, %75 : vector<1x256xi32>
    %77 = arith.andi %72, %76 : vector<1x256xi1>
    %78 = arith.extui %77 : vector<1x256xi1> to vector<1x256xi32>
    %79 = arith.sitofp %78 : vector<1x256xi32> to vector<1x256xf32>
    %80 = arith.truncf %79 : vector<1x256xf32> to vector<1x256xbf16>
    %c3_i32 = arith.constant 3 : i32
    %81 = vector.broadcast %c3_i32 : i32 to vector<1x256xi32>
    %82 = arith.addi %20, %81 : vector<1x256xi32>
    %c0_i32_22 = arith.constant 0 : i32
    %83 = vector.broadcast %c0_i32_22 : i32 to vector<1x256xi32>
    %84 = arith.cmpi sge, %82, %83 : vector<1x256xi32>
    %c3_i32_23 = arith.constant 3 : i32
    %85 = vector.broadcast %c3_i32_23 : i32 to vector<1x256xi32>
    %86 = arith.addi %20, %85 : vector<1x256xi32>
    %c16_i32_24 = arith.constant 16 : i32
    %87 = vector.broadcast %c16_i32_24 : i32 to vector<1x256xi32>
    %88 = arith.cmpi slt, %86, %87 : vector<1x256xi32>
    %89 = arith.andi %84, %88 : vector<1x256xi1>
    %90 = arith.extui %89 : vector<1x256xi1> to vector<1x256xi32>
    %91 = arith.sitofp %90 : vector<1x256xi32> to vector<1x256xf32>
    %92 = arith.truncf %91 : vector<1x256xf32> to vector<1x256xbf16>
    %c-4_i32 = arith.constant -4 : i32
    %93 = vector.broadcast %c-4_i32 : i32 to vector<1x256xi32>
    %94 = arith.addi %20, %93 : vector<1x256xi32>
    %c0_i32_25 = arith.constant 0 : i32
    %95 = vector.broadcast %c0_i32_25 : i32 to vector<1x256xi32>
    %96 = arith.cmpi sge, %94, %95 : vector<1x256xi32>
    %c-4_i32_26 = arith.constant -4 : i32
    %97 = vector.broadcast %c-4_i32_26 : i32 to vector<1x256xi32>
    %98 = arith.addi %20, %97 : vector<1x256xi32>
    %c16_i32_27 = arith.constant 16 : i32
    %99 = vector.broadcast %c16_i32_27 : i32 to vector<1x256xi32>
    %100 = arith.cmpi slt, %98, %99 : vector<1x256xi32>
    %101 = arith.andi %96, %100 : vector<1x256xi1>
    %102 = arith.extui %101 : vector<1x256xi1> to vector<1x256xi32>
    %103 = arith.sitofp %102 : vector<1x256xi32> to vector<1x256xf32>
    %104 = arith.truncf %103 : vector<1x256xf32> to vector<1x256xbf16>
    %c4_i32 = arith.constant 4 : i32
    %105 = vector.broadcast %c4_i32 : i32 to vector<1x256xi32>
    %106 = arith.addi %20, %105 : vector<1x256xi32>
    %c0_i32_28 = arith.constant 0 : i32
    %107 = vector.broadcast %c0_i32_28 : i32 to vector<1x256xi32>
    %108 = arith.cmpi sge, %106, %107 : vector<1x256xi32>
    %c4_i32_29 = arith.constant 4 : i32
    %109 = vector.broadcast %c4_i32_29 : i32 to vector<1x256xi32>
    %110 = arith.addi %20, %109 : vector<1x256xi32>
    %c16_i32_30 = arith.constant 16 : i32
    %111 = vector.broadcast %c16_i32_30 : i32 to vector<1x256xi32>
    %112 = arith.cmpi slt, %110, %111 : vector<1x256xi32>
    %113 = arith.andi %108, %112 : vector<1x256xi1>
    %114 = arith.extui %113 : vector<1x256xi1> to vector<1x256xi32>
    %115 = arith.sitofp %114 : vector<1x256xi32> to vector<1x256xf32>
    %116 = arith.truncf %115 : vector<1x256xf32> to vector<1x256xbf16>
    %117 = vector.extract_strided_slice %3 {offsets = [0, 111], sizes = [16, 256], strides = [1, 1]} : vector<16x512xbf16> to vector<16x256xbf16>
    %118 = vector.broadcast %32 : vector<1x256xbf16> to vector<16x256xbf16>
    %119 = arith.mulf %117, %118 : vector<16x256xbf16>
    %120 = vector.extract_strided_slice %3 {offsets = [0, 112], sizes = [16, 256], strides = [1, 1]} : vector<16x512xbf16> to vector<16x256xbf16>
    %121 = vector.extract_strided_slice %3 {offsets = [0, 113], sizes = [16, 256], strides = [1, 1]} : vector<16x512xbf16> to vector<16x256xbf16>
    %122 = vector.broadcast %44 : vector<1x256xbf16> to vector<16x256xbf16>
    %123 = arith.mulf %121, %122 : vector<16x256xbf16>
    %124 = vector.extract_strided_slice %3 {offsets = [0, 127], sizes = [16, 256], strides = [1, 1]} : vector<16x512xbf16> to vector<16x256xbf16>
    %125 = vector.broadcast %32 : vector<1x256xbf16> to vector<16x256xbf16>
    %126 = arith.mulf %124, %125 : vector<16x256xbf16>
    %127 = vector.extract_strided_slice %3 {offsets = [0, 128], sizes = [16, 256], strides = [1, 1]} : vector<16x512xbf16> to vector<16x256xbf16>
    %128 = vector.extract_strided_slice %3 {offsets = [0, 129], sizes = [16, 256], strides = [1, 1]} : vector<16x512xbf16> to vector<16x256xbf16>
    %129 = vector.broadcast %44 : vector<1x256xbf16> to vector<16x256xbf16>
    %130 = arith.mulf %128, %129 : vector<16x256xbf16>
    %131 = vector.extract_strided_slice %3 {offsets = [0, 143], sizes = [16, 256], strides = [1, 1]} : vector<16x512xbf16> to vector<16x256xbf16>
    %132 = vector.broadcast %32 : vector<1x256xbf16> to vector<16x256xbf16>
    %133 = arith.mulf %131, %132 : vector<16x256xbf16>
    %134 = vector.extract_strided_slice %3 {offsets = [0, 144], sizes = [16, 256], strides = [1, 1]} : vector<16x512xbf16> to vector<16x256xbf16>
    %135 = vector.extract_strided_slice %3 {offsets = [0, 145], sizes = [16, 256], strides = [1, 1]} : vector<16x512xbf16> to vector<16x256xbf16>
    %136 = vector.broadcast %44 : vector<1x256xbf16> to vector<16x256xbf16>
    %137 = arith.mulf %135, %136 : vector<16x256xbf16>
    %138 = vector.extract_strided_slice %3 {offsets = [0, 94], sizes = [16, 256], strides = [1, 1]} : vector<16x512xbf16> to vector<16x256xbf16>
    %139 = vector.broadcast %56 : vector<1x256xbf16> to vector<16x256xbf16>
    %140 = arith.mulf %138, %139 : vector<16x256xbf16>
    %141 = vector.extract_strided_slice %3 {offsets = [0, 96], sizes = [16, 256], strides = [1, 1]} : vector<16x512xbf16> to vector<16x256xbf16>
    %142 = vector.extract_strided_slice %3 {offsets = [0, 98], sizes = [16, 256], strides = [1, 1]} : vector<16x512xbf16> to vector<16x256xbf16>
    %143 = vector.broadcast %68 : vector<1x256xbf16> to vector<16x256xbf16>
    %144 = arith.mulf %142, %143 : vector<16x256xbf16>
    %145 = vector.extract_strided_slice %3 {offsets = [0, 126], sizes = [16, 256], strides = [1, 1]} : vector<16x512xbf16> to vector<16x256xbf16>
    %146 = vector.broadcast %56 : vector<1x256xbf16> to vector<16x256xbf16>
    %147 = arith.mulf %145, %146 : vector<16x256xbf16>
    %148 = vector.extract_strided_slice %3 {offsets = [0, 128], sizes = [16, 256], strides = [1, 1]} : vector<16x512xbf16> to vector<16x256xbf16>
    %149 = vector.extract_strided_slice %3 {offsets = [0, 130], sizes = [16, 256], strides = [1, 1]} : vector<16x512xbf16> to vector<16x256xbf16>
    %150 = vector.broadcast %68 : vector<1x256xbf16> to vector<16x256xbf16>
    %151 = arith.mulf %149, %150 : vector<16x256xbf16>
    %152 = vector.extract_strided_slice %3 {offsets = [0, 158], sizes = [16, 256], strides = [1, 1]} : vector<16x512xbf16> to vector<16x256xbf16>
    %153 = vector.broadcast %56 : vector<1x256xbf16> to vector<16x256xbf16>
    %154 = arith.mulf %152, %153 : vector<16x256xbf16>
    %155 = vector.extract_strided_slice %3 {offsets = [0, 160], sizes = [16, 256], strides = [1, 1]} : vector<16x512xbf16> to vector<16x256xbf16>
    %156 = vector.extract_strided_slice %3 {offsets = [0, 162], sizes = [16, 256], strides = [1, 1]} : vector<16x512xbf16> to vector<16x256xbf16>
    %157 = vector.broadcast %68 : vector<1x256xbf16> to vector<16x256xbf16>
    %158 = arith.mulf %156, %157 : vector<16x256xbf16>
    %159 = vector.extract_strided_slice %3 {offsets = [0, 77], sizes = [16, 256], strides = [1, 1]} : vector<16x512xbf16> to vector<16x256xbf16>
    %160 = vector.broadcast %80 : vector<1x256xbf16> to vector<16x256xbf16>
    %161 = arith.mulf %159, %160 : vector<16x256xbf16>
    %162 = vector.extract_strided_slice %3 {offsets = [0, 80], sizes = [16, 256], strides = [1, 1]} : vector<16x512xbf16> to vector<16x256xbf16>
    %163 = vector.extract_strided_slice %3 {offsets = [0, 83], sizes = [16, 256], strides = [1, 1]} : vector<16x512xbf16> to vector<16x256xbf16>
    %164 = vector.broadcast %92 : vector<1x256xbf16> to vector<16x256xbf16>
    %165 = arith.mulf %163, %164 : vector<16x256xbf16>
    %166 = vector.extract_strided_slice %3 {offsets = [0, 125], sizes = [16, 256], strides = [1, 1]} : vector<16x512xbf16> to vector<16x256xbf16>
    %167 = vector.broadcast %80 : vector<1x256xbf16> to vector<16x256xbf16>
    %168 = arith.mulf %166, %167 : vector<16x256xbf16>
    %169 = vector.extract_strided_slice %3 {offsets = [0, 128], sizes = [16, 256], strides = [1, 1]} : vector<16x512xbf16> to vector<16x256xbf16>
    %170 = vector.extract_strided_slice %3 {offsets = [0, 131], sizes = [16, 256], strides = [1, 1]} : vector<16x512xbf16> to vector<16x256xbf16>
    %171 = vector.broadcast %92 : vector<1x256xbf16> to vector<16x256xbf16>
    %172 = arith.mulf %170, %171 : vector<16x256xbf16>
    %173 = vector.extract_strided_slice %3 {offsets = [0, 173], sizes = [16, 256], strides = [1, 1]} : vector<16x512xbf16> to vector<16x256xbf16>
    %174 = vector.broadcast %80 : vector<1x256xbf16> to vector<16x256xbf16>
    %175 = arith.mulf %173, %174 : vector<16x256xbf16>
    %176 = vector.extract_strided_slice %3 {offsets = [0, 176], sizes = [16, 256], strides = [1, 1]} : vector<16x512xbf16> to vector<16x256xbf16>
    %177 = vector.extract_strided_slice %3 {offsets = [0, 179], sizes = [16, 256], strides = [1, 1]} : vector<16x512xbf16> to vector<16x256xbf16>
    %178 = vector.broadcast %92 : vector<1x256xbf16> to vector<16x256xbf16>
    %179 = arith.mulf %177, %178 : vector<16x256xbf16>
    %180 = vector.extract_strided_slice %3 {offsets = [0, 60], sizes = [16, 256], strides = [1, 1]} : vector<16x512xbf16> to vector<16x256xbf16>
    %181 = vector.broadcast %104 : vector<1x256xbf16> to vector<16x256xbf16>
    %182 = arith.mulf %180, %181 : vector<16x256xbf16>
    %183 = vector.extract_strided_slice %3 {offsets = [0, 64], sizes = [16, 256], strides = [1, 1]} : vector<16x512xbf16> to vector<16x256xbf16>
    %184 = vector.extract_strided_slice %3 {offsets = [0, 68], sizes = [16, 256], strides = [1, 1]} : vector<16x512xbf16> to vector<16x256xbf16>
    %185 = vector.broadcast %116 : vector<1x256xbf16> to vector<16x256xbf16>
    %186 = arith.mulf %184, %185 : vector<16x256xbf16>
    %187 = vector.extract_strided_slice %3 {offsets = [0, 124], sizes = [16, 256], strides = [1, 1]} : vector<16x512xbf16> to vector<16x256xbf16>
    %188 = vector.broadcast %104 : vector<1x256xbf16> to vector<16x256xbf16>
    %189 = arith.mulf %187, %188 : vector<16x256xbf16>
    %190 = vector.extract_strided_slice %3 {offsets = [0, 128], sizes = [16, 256], strides = [1, 1]} : vector<16x512xbf16> to vector<16x256xbf16>
    %191 = vector.extract_strided_slice %3 {offsets = [0, 132], sizes = [16, 256], strides = [1, 1]} : vector<16x512xbf16> to vector<16x256xbf16>
    %192 = vector.broadcast %116 : vector<1x256xbf16> to vector<16x256xbf16>
    %193 = arith.mulf %191, %192 : vector<16x256xbf16>
    %194 = vector.extract_strided_slice %3 {offsets = [0, 188], sizes = [16, 256], strides = [1, 1]} : vector<16x512xbf16> to vector<16x256xbf16>
    %195 = vector.broadcast %104 : vector<1x256xbf16> to vector<16x256xbf16>
    %196 = arith.mulf %194, %195 : vector<16x256xbf16>
    %197 = vector.extract_strided_slice %3 {offsets = [0, 192], sizes = [16, 256], strides = [1, 1]} : vector<16x512xbf16> to vector<16x256xbf16>
    %198 = vector.extract_strided_slice %3 {offsets = [0, 196], sizes = [16, 256], strides = [1, 1]} : vector<16x512xbf16> to vector<16x256xbf16>
    %199 = vector.broadcast %116 : vector<1x256xbf16> to vector<16x256xbf16>
    %200 = arith.mulf %198, %199 : vector<16x256xbf16>
    %201 = tpu.concatenate %119, %120, %123, %126, %127, %130, %133, %134, %137, %140, %141, %144, %147, %148, %151, %154 in 0 : vector<16x256xbf16>, vector<16x256xbf16>, vector<16x256xbf16>, vector<16x256xbf16>, vector<16x256xbf16>, vector<16x256xbf16>, vector<16x256xbf16>, vector<16x256xbf16>, vector<16x256xbf16>, vector<16x256xbf16>, vector<16x256xbf16>, vector<16x256xbf16>, vector<16x256xbf16>, vector<16x256xbf16>, vector<16x256xbf16>, vector<16x256xbf16> -> vector<256x256xbf16>
    %202 = tpu.concatenate %155, %158, %161, %162, %165, %168, %169, %172, %175, %176, %179, %182, %183, %186, %189, %190 in 0 : vector<16x256xbf16>, vector<16x256xbf16>, vector<16x256xbf16>, vector<16x256xbf16>, vector<16x256xbf16>, vector<16x256xbf16>, vector<16x256xbf16>, vector<16x256xbf16>, vector<16x256xbf16>, vector<16x256xbf16>, vector<16x256xbf16>, vector<16x256xbf16>, vector<16x256xbf16>, vector<16x256xbf16>, vector<16x256xbf16>, vector<16x256xbf16> -> vector<256x256xbf16>
    %203 = tpu.concatenate %193, %196, %197, %200 in 0 : vector<16x256xbf16>, vector<16x256xbf16>, vector<16x256xbf16>, vector<16x256xbf16> -> vector<64x256xbf16>
    %204 = tpu.concatenate %201, %202, %203 in 0 : vector<256x256xbf16>, vector<256x256xbf16>, vector<64x256xbf16> -> vector<576x256xbf16>
    %c0_31 = arith.constant 0 : index
    %c0_32 = arith.constant 0 : index
    %205 = vector.load %arg3[%c0_31, %c0_32] : memref<8x576xbf16, #tpu.memory_space<vmem>>, vector<8x576xbf16>
    %cst = arith.constant dense<0.000000e+00> : vector<8x256xf32>
    %206 = tpu.matmul %205, %204, %cst {dimension_numbers = #tpu.dot_dimension_numbers<[1], [0], [0], [1], [0, 0, 1, 1], [], []>} : vector<8x576xbf16>, vector<576x256xbf16>, vector<8x256xf32> -> vector<8x256xf32>
    %c0_33 = arith.constant 0 : index
    %c0_34 = arith.constant 0 : index
    %207 = vector.load %arg4[%c0_33, %c0_34] : memref<8x1xf32, #tpu.memory_space<vmem>>, vector<8x1xf32>
    %208 = vector.broadcast %207 : vector<8x1xf32> to vector<8x256xf32>
    %209 = arith.addf %206, %208 : vector<8x256xf32>
    %cst_35 = arith.constant 0.000000e+00 : f32
    %210 = vector.broadcast %cst_35 : f32 to vector<8x256xf32>
    %211 = arith.maximumf %209, %210 : vector<8x256xf32>
    %c0_36 = arith.constant 0 : index
    %c0_37 = arith.constant 0 : index
    %c0_38 = arith.constant 0 : index
    %212 = vector.load %arg5[%c0_36, %c0_37, %c0_38] : memref<1x8x256xf32, #tpu.memory_space<vmem>>, vector<1x8x256xf32>
    %213 = vector.shape_cast %212 : vector<1x8x256xf32> to vector<8x256xf32>
    %214 = vector.shape_cast %211 : vector<8x256xf32> to vector<1x8x256xf32>
    tpu.vector_store %arg5[%c0_36, %c0_37, %c0_38], %214 {strides = array<i32>} : memref<1x8x256xf32, #tpu.memory_space<vmem>>, vector<1x8x256xf32>,
    return
  }
  func.func @transform_0(%arg0: i32, %arg1: i32) -> (i32, i32, i32) {
    %c0_i32 = arith.constant 0 : i32
    %c0_i32_0 = arith.constant 0 : i32
    %c0_i32_1 = arith.constant 0 : i32
    return %arg0, %c0_i32, %c0_i32_0 : i32, i32, i32
  }
  func.func @transform_1(%arg0: i32, %arg1: i32) -> (i32, i32) {
    %c0_i32 = arith.constant 0 : i32
    %c0_i32_0 = arith.constant 0 : i32
    %c0_i32_1 = arith.constant 0 : i32
    return %c0_i32, %c0_i32_0 : i32, i32
  }
  func.func @transform_2(%arg0: i32, %arg1: i32) -> (i32, i32) {
    %c0_i32 = arith.constant 0 : i32
    %c0_i32_0 = arith.constant 0 : i32
    %c0_i32_1 = arith.constant 0 : i32
    return %c0_i32, %c0_i32_0 : i32, i32
  }
  func.func @transform_3(%arg0: i32, %arg1: i32) -> (i32, i32, i32) {
    %c0_i32 = arith.constant 0 : i32
    %c0_i32_0 = arith.constant 0 : i32
    return %arg0, %c0_i32, %arg1 : i32, i32, i32
  }
}

</mosaic_0001>

<llo_original>
// kernel: aspp_pallas.1
$region0: #{aspp_pallas.1}
  #allocation0 [shape = 'u32[]', space=smem, size = 0x4, offset = 0x4, fixed_abs, tag = 'smem constant byte address 0x4 - core index']
  #allocation1 [shape = 'u32[144,128]{1,0:T(1,128)}', space=vmem, size = 0x12000, scoped, tag = 'internal scratch']
  #allocation2 [shape = 'bf16[16,512]{1,0:T(16,128)(2,1)}', space=vmem, size = 0x4000, scoped, tag = 'scratch operand']
  %s0 = inlined_call_operand.vmem [shape: f32[2,8,256], index: 0, kind: input, shape index: {}]
  %s1 = inlined_call_operand.vmem [shape: bf16[8,576], index: 1, kind: input, shape index: {}]
  %s2 = inlined_call_operand.vmem [shape: f32[8,1], index: 2, kind: input, shape index: {}]
  %s3 = inlined_call_operand.vmem [shape: f32[2,8,256], index: 3, kind: output, shape index: {}]
  %s4 = sld [smem:[#allocation0]]
  $region49: #{aspp_pallas.1} parent=0
    _
  %s6 = ssub.s32 1, %s4
  %s7 = scalar_select 0, %s6, %s4
  loop: start=0, step=1, limit=4
  $region2: #{aspp_pallas.1} parent=0 // loop_pre_header
    _
  $region3: #{aspp_pallas.1} parent=0 // loop_header
    %s9 = sphi 0, %s13
    %p10 = scmp.ge.s32.totalorder %s9, 4
    %s16 = sphi 0, %s28
    %s17 = sphi 0, %s24
    %s18 = sphi 0, %s16
    %s19 = sphi 0, %s17
    %s20 = sphi 0, %s18
    %s21 = sphi 0, %s19
    %s31 = sphi 0, %s33
    %s34 = sphi 0, %s31
    %s35 = sphi 0, %s34
    %s51 = sphi 0, %s35
    %s55 = sphi 0, %s55
    %s57 = sphi 0, %s55
    %s58 = sphi 0, %s57
    %s72 = sphi 0, %s58
    %s76 = sphi 0, %s76
    %s78 = sphi 0, %s76
    %s79 = sphi 0, %s78
    %s93 = sphi 0, %s79
    %s101 = sphi 0, %s103
    %s104 = sphi 0, %s101
    %s105 = sphi 0, %s104
    %s121 = sphi 0, %s105
  $region4: #{aspp_pallas.1} parent=0 // loop_header_branch
    %12 = sbr.rel (%p10) target = $region8
  $region5: #{aspp_pallas.1} parent=0 // loop_body
    %s14 = ssub.s32 %s9, 1
    %s15 = ssub.s32 %s9, 2
    %s22 = sadd.s32 1, %s17
    %p23 = scmp.ge.s32.totalorder %s22, 1
    %s24 = scalar_select %p23, 0, %s22
    %s25 = sadd.s32 1, %s16
    %s26 = scalar_select %p23, %s25, %s16
    %p27 = scmp.ge.s32.totalorder %s26, 2
    %s28 = scalar_select %p27, 0, %s26
    %s29 = ssub.s32 %s16, %s28
    %p30 = scmp.eq.s32.totalorder %s29, 0
    %s32 = sadd.s32 %s31, 1
    %s33 = scalar_select %p30, %s31, %s32
    %p36 = pneg %p30
    %p37 = scmp.eq.s32.totalorder %s9, 1
    %p38 = por %p36, %p37
    %p39 = scmp.ne.s32.totalorder %s31, %s34
    %p40 = scmp.eq.s32.totalorder %s9, 0
    %p41 = por %p39, %p40
    %p42 = scmp.ne.s32.totalorder %s31, %s34
    %p43 = scmp.eq.s32.totalorder %s14, 1
    %p44 = por %p42, %p43
    %p45 = scmp.ne.s32.totalorder %s34, %s35
    %p46 = scmp.eq.s32.totalorder %s14, 0
    %p47 = por %p45, %p46
    %p48 = scmp.ne.s32.totalorder %s34, %s35
    %p49 = scmp.eq.s32.totalorder %s15, 1
    %p50 = por %p48, %p49
    %p52 = scmp.ne.s32.totalorder %s35, %s51
    %p53 = scmp.eq.s32.totalorder %s15, 0
    %p54 = por %p52, %p53
    %s56 = sadd.s32 %s55, 1
    %p59 = scmp.eq.s32.totalorder %s9, 1
    %p60 = scmp.ne.s32.totalorder %s55, %s57
    %p61 = scmp.eq.s32.totalorder %s9, 0
    %p62 = por %p60, %p61
    %p63 = scmp.ne.s32.totalorder %s55, %s57
    %p64 = scmp.eq.s32.totalorder %s14, 1
    %p65 = por %p63, %p64
    %p66 = scmp.ne.s32.totalorder %s57, %s58
    %p67 = scmp.eq.s32.totalorder %s14, 0
    %p68 = por %p66, %p67
    %p69 = scmp.ne.s32.totalorder %s57, %s58
    %p70 = scmp.eq.s32.totalorder %s15, 1
    %p71 = por %p69, %p70
    %p73 = scmp.ne.s32.totalorder %s58, %s72
    %p74 = scmp.eq.s32.totalorder %s15, 0
    %p75 = por %p73, %p74
    %s77 = sadd.s32 %s76, 1
    %p80 = scmp.eq.s32.totalorder %s9, 1
    %p81 = scmp.ne.s32.totalorder %s76, %s78
    %p82 = scmp.eq.s32.totalorder %s9, 0
    %p83 = por %p81, %p82
    %p84 = scmp.ne.s32.totalorder %s76, %s78
    %p85 = scmp.eq.s32.totalorder %s14, 1
    %p86 = por %p84, %p85
    %p87 = scmp.ne.s32.totalorder %s78, %s79
    %p88 = scmp.eq.s32.totalorder %s14, 0
    %p89 = por %p87, %p88
    %p90 = scmp.ne.s32.totalorder %s78, %s79
    %p91 = scmp.eq.s32.totalorder %s15, 1
    %p92 = por %p90, %p91
    %p94 = scmp.ne.s32.totalorder %s79, %s93
    %p95 = scmp.eq.s32.totalorder %s15, 0
    %p96 = por %p94, %p95
    %s97 = ssub.s32 %s16, %s28
    %s98 = ssub.s32 %s17, %s24
    %s99 = sor.u32 %s97, %s98
    %p100 = scmp.eq.s32.totalorder %s99, 0
    %s102 = sadd.s32 %s101, 1
    %s103 = scalar_select %p100, %s101, %s102
    %p106 = pneg %p100
    %p107 = scmp.eq.s32.totalorder %s9, 1
    %p108 = por %p106, %p107
    %p109 = scmp.ne.s32.totalorder %s101, %s104
    %p110 = scmp.eq.s32.totalorder %s9, 0
    %p111 = por %p109, %p110
    %p112 = scmp.ne.s32.totalorder %s101, %s104
    %p113 = scmp.eq.s32.totalorder %s14, 1
    %p114 = por %p112, %p113
    %p115 = scmp.ne.s32.totalorder %s104, %s105
    %p116 = scmp.eq.s32.totalorder %s14, 0
    %p117 = por %p115, %p116
    %p118 = scmp.ne.s32.totalorder %s104, %s105
    %p119 = scmp.eq.s32.totalorder %s15, 1
    %p120 = por %p118, %p119
    %p122 = scmp.ne.s32.totalorder %s105, %s121
    %p123 = scmp.eq.s32.totalorder %s15, 0
    %p124 = por %p122, %p123
    %p125 = scmp.le.s32.totalorder 1, %s9
    %p126 = scmp.lt.s32.totalorder %s9, 3
    %p127 = pnand %p125, %p126
    %p128 = pneg %p127
    // Predicated region
    $region9: #{aspp_pallas.1} parent=5 // pred_check
      _
    $region10: #{aspp_pallas.1} parent=5 // pred_check_branch
      %130 = sbr.rel (%p127) target = $region12
    $region11: #{aspp_pallas.1} parent=5 // pred_region
      %s131 = ssub.s32 %s9, 1
      // Predicated region
      $region13: #{aspp_pallas.1} parent=11 // pred_check
        %p132 = pneg %p68
      $region14: #{aspp_pallas.1} parent=11 // pred_check_branch
        %134 = sbr.rel (%p132) target = $region16
      $region15: #{aspp_pallas.1} parent=11 // pred_region
        _
      $region16: #{aspp_pallas.1} parent=11 // pred_fallthru
        _
      // Predicated region
      $region17: #{aspp_pallas.1} parent=11 // pred_check
        %p135 = pneg %p89
      $region18: #{aspp_pallas.1} parent=11 // pred_check_branch
        %137 = sbr.rel (%p135) target = $region20
      $region19: #{aspp_pallas.1} parent=11 // pred_region
        _
      $region20: #{aspp_pallas.1} parent=11 // pred_fallthru
        _
    $region12: #{aspp_pallas.1} parent=5 // pred_fallthru
      _
    %p138 = scmp.lt.s32.totalorder %s9, 2
    // Predicated region
    $region21: #{aspp_pallas.1} parent=5 // pred_check
      %p139 = pneg %p138
    $region22: #{aspp_pallas.1} parent=5 // pred_check_branch
      %141 = sbr.rel (%p139) target = $region24
    $region23: #{aspp_pallas.1} parent=5 // pred_region
      // Predicated region
      $region25: #{aspp_pallas.1} parent=23 // pred_check
        %p142 = pneg %p41
      $region26: #{aspp_pallas.1} parent=23 // pred_check_branch
        %144 = sbr.rel (%p142) target = $region28
      $region27: #{aspp_pallas.1} parent=23 // pred_region
        %p145 = scmp.lt.s32.totalorder %s16, 1
        %s146 = scalar_select %p145, %s16, 1
        %s147 = smul.addr %s146, 2
        %s148 = smul.addr %s147, 8
        %s149 = scalar_lea.vmem %s0, %s148
      $region28: #{aspp_pallas.1} parent=23 // pred_fallthru
        _
    $region24: #{aspp_pallas.1} parent=5 // pred_fallthru
      _
    %p150 = scmp.le.s32.totalorder 1, %s9
    %p151 = scmp.lt.s32.totalorder %s9, 3
    %p152 = pnand %p150, %p151
    %p153 = pneg %p152
    // Predicated region
    $region29: #{aspp_pallas.1} parent=5 // pred_check
      _
    $region30: #{aspp_pallas.1} parent=5 // pred_check_branch
      %155 = sbr.rel (%p152) target = $region32
    $region31: #{aspp_pallas.1} parent=5 // pred_region
      %s156 = ssub.s32 %s9, 1
      %p157 = scmp.lt.s32.totalorder %s18, 1
      %s158 = scalar_select %p157, %s18, 1
      %s159 = smul.addr %s158, 2
      %s160 = smul.addr %s159, 8
      %s161 = scalar_lea.vmem %s0, %s160
      %p162 = pneg %p47
      %p163 = pneg %p44
      %p164 = pneg %p68
      %p165 = pneg %p65
      %p166 = pneg %p89
      %p167 = pneg %p86
      %p168 = pneg %p117
      %p169 = pneg %p114
      %s170 = smul.u32 2, %s19
      %p171 = scmp.lt.s32.totalorder %s18, 1
      %s172 = scalar_select %p171, %s18, 1
      %p173 = scmp.lt.s32.totalorder %s170, 1
      %s174 = scalar_select %p173, %s170, 1
      %s175 = smul.addr %s172, 2
      %s176 = sadd.s32 %s174, %s175
      %s177 = smul.addr %s176, 8
      %s178 = scalar_lea.vmem %s3, %s177
      %p179 = scmp.lt.s32.totalorder %s18, 1
      %s180 = scalar_select %p179, %s18, 1
      %s181 = smul.addr %s180, 2
      %s182 = smul.addr %s181, 8
      %s183 = scalar_lea.vmem %s0, %s182
      %s184 = smul.u32 2, %s19
      %p185 = scmp.lt.s32.totalorder %s18, 1
      %s186 = scalar_select %p185, %s18, 1
      %p187 = scmp.lt.s32.totalorder %s184, 1
      %s188 = scalar_select %p187, %s184, 1
      %s189 = smul.addr %s186, 2
      %s190 = sadd.s32 %s188, %s189
      %s191 = smul.addr %s190, 8
      %s192 = scalar_lea.vmem %s3, %s191
      %s193 = smul.u32 2, %s19
      %p195 = scmp.eq.s32.totalorder %s19, 0
      // Predicated region
      $region33: #{aspp_pallas.1} parent=31 // pred_check
        %p196 = pneg %p195
      $region34: #{aspp_pallas.1} parent=31 // pred_check_branch
        %198 = sbr.rel (%p196) target = $region36
      $region35: #{aspp_pallas.1} parent=31 // pred_region
        %199 = vst [vmem:[#allocation2] sm:$0xf0] 0
        %200 = vst [vmem:[#allocation2 + $0x8] sm:$0xf0] 0
        %201 = vst [vmem:[#allocation2 + $0x10] sm:$0xf0] 0
        %202 = vst [vmem:[#allocation2 + $0x18] sm:$0xf0] 0
        %203 = vst [vmem:[#allocation2] sm:$0xf] 0
        %204 = vst [vmem:[#allocation2 + $0x18] sm:$0xf] 0
        %v205 = vld [vmem:[%s183] sm:$0xff]
        %v206 = vld [vmem:[%s183 + $0x8] sm:$0xff]
        %v207 = vpack.c.bf16 %v205, %v205
        %v208 = vpack.c.bf16 %v206, %v206
        %209 = vst [vmem:[#allocation2 + $0x8] sm:$0xf] %v207
        %210 = vst [vmem:[#allocation2 + $0x10] sm:$0xf] %v208
      $region36: #{aspp_pallas.1} parent=31 // pred_fallthru
        _
      %v211 = vld [vmem:[#allocation2] sm:$0xff]
      %v212 = vld [vmem:[#allocation2 + $0x8] sm:$0xff]
      %v213 = vld [vmem:[#allocation2 + $0x10] sm:$0xff]
      %v214 = vld [vmem:[#allocation2 + $0x18] sm:$0xff]
      %v215 = vlaneseq
      %v216 = vand.u32 %v215, 127
      %v217 = vadd.s32 %v216, 128
      %vm218 = vcmp.lt.s32.totalorder %v216, 0
      %v219 = vsub.s32 0, %v216
      %v220 = vsel %vm218, %v219, %v216
      %v221 = vshrl.u32 %v220, 4
      %v222 = vand.u32 %v220, 15
      %v223 = vsub.s32 0, %v222
      %v224 = vsel %vm218, %v223, %v222
      %vm225 = vcmp.lt.s32.totalorder %v217, 0
      %v226 = vsub.s32 0, %v217
      %v227 = vsel %vm225, %v226, %v217
      %v228 = vshrl.u32 %v227, 4
      %v229 = vand.u32 %v227, 15
      %v230 = vsub.s32 0, %v229
      %v231 = vsel %vm225, %v230, %v229
      %vm232 = vcmp.ne.s32.totalorder %v224, 0
      %vm233 = vcmp.ne.s32.totalorder %v231, 0
      %vm234 = vcmp.lt.s32.totalorder %v224, 0
      %vm235 = vcmp.lt.s32.totalorder %v231, 0
      %vm236 = vmand %vm234, %vm232
      %vm237 = vmand %vm235, %vm233
      %v238 = vadd.s32 %v224, 16
      %v239 = vadd.s32 %v231, 16
      %v240 = vsel %vm236, %v238, %v224
      %v241 = vsel %vm237, %v239, %v231
      %v242 = vadd.s32 %v240, 4294967295
      %v243 = vadd.s32 %v241, 4294967295
      %vm244 = vcmp.ge.s32.totalorder %v242, 0
      %vm245 = vcmp.ge.s32.totalorder %v243, 0
      %vm246 = vcmp.lt.s32.totalorder %v242, 16
      %vm247 = vcmp.lt.s32.totalorder %v243, 16
      %vm248 = vmand %vm244, %vm246
      %vm249 = vmand %vm245, %vm247
      %v250 = vsel %vm248, 1, 0
      %v251 = vsel %vm249, 1, 0
      %v252 = vcvt.s32.f32 %v250
      %v253 = vcvt.s32.f32 %v251
      %v254 = vpack.c.bf16 %v252, %v252
      %v255 = vpack.c.bf16 %v253, %v253
      %v256 = vadd.s32 %v240, 1
      %v257 = vadd.s32 %v241, 1
      %vm258 = vcmp.ge.s32.totalorder %v256, 0
      %vm259 = vcmp.ge.s32.totalorder %v257, 0
      %vm260 = vcmp.lt.s32.totalorder %v256, 16
      %vm261 = vcmp.lt.s32.totalorder %v257, 16
      %vm262 = vmand %vm258, %vm260
      %vm263 = vmand %vm259, %vm261
      %v264 = vsel %vm262, 1, 0
      %v265 = vsel %vm263, 1, 0
      %v266 = vcvt.s32.f32 %v264
      %v267 = vcvt.s32.f32 %v265
      %v268 = vpack.c.bf16 %v266, %v266
      %v269 = vpack.c.bf16 %v267, %v267
      %v270 = vadd.s32 %v240, 4294967294
      %v271 = vadd.s32 %v241, 4294967294
      %vm272 = vcmp.ge.s32.totalorder %v270, 0
      %vm273 = vcmp.ge.s32.totalorder %v271, 0
      %vm274 = vcmp.lt.s32.totalorder %v270, 16
      %vm275 = vcmp.lt.s32.totalorder %v271, 16
      %vm276 = vmand %vm272, %vm274
      %vm277 = vmand %vm273, %vm275
      %v278 = vsel %vm276, 1, 0
      %v279 = vsel %vm277, 1, 0
      %v280 = vcvt.s32.f32 %v278
      %v281 = vcvt.s32.f32 %v279
      %v282 = vpack.c.bf16 %v280, %v280
      %v283 = vpack.c.bf16 %v281, %v281
      %v284 = vadd.s32 %v240, 2
      %v285 = vadd.s32 %v241, 2
      %vm286 = vcmp.ge.s32.totalorder %v284, 0
      %vm287 = vcmp.ge.s32.totalorder %v285, 0
      %vm288 = vcmp.lt.s32.totalorder %v284, 16
      %vm289 = vcmp.lt.s32.totalorder %v285, 16
      %vm290 = vmand %vm286, %vm288
      %vm291 = vmand %vm287, %vm289
      %v292 = vsel %vm290, 1, 0
      %v293 = vsel %vm291, 1, 0
      %v294 = vcvt.s32.f32 %v292
      %v295 = vcvt.s32.f32 %v293
      %v296 = vpack.c.bf16 %v294, %v294
      %v297 = vpack.c.bf16 %v295, %v295
      %v298 = vadd.s32 %v240, 4294967293
      %v299 = vadd.s32 %v241, 4294967293
      %vm300 = vcmp.ge.s32.totalorder %v298, 0
      %vm301 = vcmp.ge.s32.totalorder %v299, 0
      %vm302 = vcmp.lt.s32.totalorder %v298, 16
      %vm303 = vcmp.lt.s32.totalorder %v299, 16
      %vm304 = vmand %vm300, %vm302
      %vm305 = vmand %vm301, %vm303
      %v306 = vsel %vm304, 1, 0
      %v307 = vsel %vm305, 1, 0
      %v308 = vcvt.s32.f32 %v306
      %v309 = vcvt.s32.f32 %v307
      %v310 = vpack.c.bf16 %v308, %v308
      %v311 = vpack.c.bf16 %v309, %v309
      %v312 = vadd.s32 %v240, 3
      %v313 = vadd.s32 %v241, 3
      %vm314 = vcmp.ge.s32.totalorder %v312, 0
      %vm315 = vcmp.ge.s32.totalorder %v313, 0
      %vm316 = vcmp.lt.s32.totalorder %v312, 16
      %vm317 = vcmp.lt.s32.totalorder %v313, 16
      %vm318 = vmand %vm314, %vm316
      %vm319 = vmand %vm315, %vm317
      %v320 = vsel %vm318, 1, 0
      %v321 = vsel %vm319, 1, 0
      %v322 = vcvt.s32.f32 %v320
      %v323 = vcvt.s32.f32 %v321
      %v324 = vpack.c.bf16 %v322, %v322
      %v325 = vpack.c.bf16 %v323, %v323
      %v326 = vadd.s32 %v240, 4294967292
      %v327 = vadd.s32 %v241, 4294967292
      %vm328 = vcmp.ge.s32.totalorder %v326, 0
      %vm329 = vcmp.ge.s32.totalorder %v327, 0
      %vm330 = vcmp.lt.s32.totalorder %v326, 16
      %vm331 = vcmp.lt.s32.totalorder %v327, 16
      %vm332 = vmand %vm328, %vm330
      %vm333 = vmand %vm329, %vm331
      %v334 = vsel %vm332, 1, 0
      %v335 = vsel %vm333, 1, 0
      %v336 = vcvt.s32.f32 %v334
      %v337 = vcvt.s32.f32 %v335
      %v338 = vpack.c.bf16 %v336, %v336
      %v339 = vpack.c.bf16 %v337, %v337
      %v340 = vadd.s32 %v240, 4
      %v341 = vadd.s32 %v241, 4
      %vm342 = vcmp.ge.s32.totalorder %v340, 0
      %vm343 = vcmp.ge.s32.totalorder %v341, 0
      %vm344 = vcmp.lt.s32.totalorder %v340, 16
      %vm345 = vcmp.lt.s32.totalorder %v341, 16
      %vm346 = vmand %vm342, %vm344
      %vm347 = vmand %vm343, %vm345
      %v348 = vsel %vm346, 1, 0
      %v349 = vsel %vm347, 1, 0
      %v350 = vcvt.s32.f32 %v348
      %v351 = vcvt.s32.f32 %v349
      %v352 = vpack.c.bf16 %v350, %v350
      %v353 = vpack.c.bf16 %v351, %v351
      %356 = vrot.lane.b32.xlu0 %v254, 111
      %v357 = vpop.permute.xlu0 %356
      %358 = vrot.lane.b32.xlu0 %v255, 111
      %v359 = vpop.permute.xlu0 %358
      %vm360 = vcmask 908288
      %v361 = vsel %vm360, %v357, %v359
      %v365 = vmul.bf16 %v211, %v357
      %v366 = vmul.bf16 %v212, %v361
      %v367 = vmul.bf16 %v213, %v359
      %370 = vrot.lane.b32.xlu0 %v268, 113
      %v371 = vpop.permute.xlu0 %370
      %372 = vrot.lane.b32.xlu0 %v269, 113
      %v373 = vpop.permute.xlu0 %372
      %vm374 = vcmask 924672
      %v375 = vsel %vm374, %v371, %v373
      %v379 = vmul.bf16 %v211, %v371
      %v380 = vmul.bf16 %v212, %v375
      %v381 = vmul.bf16 %v213, %v373
      %382 = vrot.lane.b32.xlu0 %v254, 127
      %v383 = vpop.permute.xlu0 %382
      %384 = vrot.lane.b32.xlu0 %v255, 127
      %v385 = vpop.permute.xlu0 %384
      %vm386 = vcmask 1039360
      %v387 = vsel %vm386, %v383, %v385
      %v391 = vmul.bf16 %v211, %v383
      %v392 = vmul.bf16 %v212, %v387
      %v393 = vmul.bf16 %v213, %v385
      %394 = vrot.lane.b32.xlu0 %v268, 1
      %v395 = vpop.permute.xlu0 %394
      %396 = vrot.lane.b32.xlu0 %v269, 1
      %v397 = vpop.permute.xlu0 %396
      %vm398 = vcmask 7168
      %v399 = vsel %vm398, %v395, %v397
      %v403 = vmul.bf16 %v212, %v395
      %v404 = vmul.bf16 %v213, %v399
      %v405 = vmul.bf16 %v214, %v397
      %406 = vrot.lane.b32.xlu0 %v254, 15
      %v407 = vpop.permute.xlu0 %406
      %408 = vrot.lane.b32.xlu0 %v255, 15
      %v409 = vpop.permute.xlu0 %408
      %vm410 = vcmask 121856
      %v411 = vsel %vm410, %v407, %v409
      %v415 = vmul.bf16 %v212, %v407
      %v416 = vmul.bf16 %v213, %v411
      %v417 = vmul.bf16 %v214, %v409
      %418 = vrot.lane.b32.xlu0 %v268, 17
      %v419 = vpop.permute.xlu0 %418
      %420 = vrot.lane.b32.xlu0 %v269, 17
      %v421 = vpop.permute.xlu0 %420
      %vm422 = vcmask 138240
      %v423 = vsel %vm422, %v419, %v421
      %v427 = vmul.bf16 %v212, %v419
      %v428 = vmul.bf16 %v213, %v423
      %v429 = vmul.bf16 %v214, %v421
      %432 = vrot.lane.b32.xlu0 %v282, 94
      %v433 = vpop.permute.xlu0 %432
      %434 = vrot.lane.b32.xlu0 %v283, 94
      %v435 = vpop.permute.xlu0 %434
      %vm436 = vcmask 769024
      %v437 = vsel %vm436, %v433, %v435
      %v441 = vmul.bf16 %v211, %v433
      %v442 = vmul.bf16 %v212, %v437
      %v443 = vmul.bf16 %v213, %v435
      %446 = vrot.lane.b32.xlu0 %v296, 98
      %v447 = vpop.permute.xlu0 %446
      %448 = vrot.lane.b32.xlu0 %v297, 98
      %v449 = vpop.permute.xlu0 %448
      %vm450 = vcmask 801792
      %v451 = vsel %vm450, %v447, %v449
      %v455 = vmul.bf16 %v211, %v447
      %v456 = vmul.bf16 %v212, %v451
      %v457 = vmul.bf16 %v213, %v449
      %458 = vrot.lane.b32.xlu0 %v282, 126
      %v459 = vpop.permute.xlu0 %458
      %460 = vrot.lane.b32.xlu0 %v283, 126
      %v461 = vpop.permute.xlu0 %460
      %vm462 = vcmask 1031168
      %v463 = vsel %vm462, %v459, %v461
      %v467 = vmul.bf16 %v211, %v459
      %v468 = vmul.bf16 %v212, %v463
      %v469 = vmul.bf16 %v213, %v461
      %470 = vrot.lane.b32.xlu0 %v296, 2
      %v471 = vpop.permute.xlu0 %470
      %472 = vrot.lane.b32.xlu0 %v297, 2
      %v473 = vpop.permute.xlu0 %472
      %vm474 = vcmask 15360
      %v475 = vsel %vm474, %v471, %v473
      %v479 = vmul.bf16 %v212, %v471
      %v480 = vmul.bf16 %v213, %v475
      %v481 = vmul.bf16 %v214, %v473
      %482 = vrot.lane.b32.xlu0 %v282, 30
      %v483 = vpop.permute.xlu0 %482
      %484 = vrot.lane.b32.xlu0 %v283, 30
      %v485 = vpop.permute.xlu0 %484
      %vm486 = vcmask 244736
      %v487 = vsel %vm486, %v483, %v485
      %v491 = vmul.bf16 %v212, %v483
      %v492 = vmul.bf16 %v213, %v487
      %v493 = vmul.bf16 %v214, %v485
      %494 = vrot.lane.b32.xlu0 %v296, 34
      %v495 = vpop.permute.xlu0 %494
      %496 = vrot.lane.b32.xlu0 %v297, 34
      %v497 = vpop.permute.xlu0 %496
      %vm498 = vcmask 277504
      %v499 = vsel %vm498, %v495, %v497
      %v503 = vmul.bf16 %v212, %v495
      %v504 = vmul.bf16 %v213, %v499
      %v505 = vmul.bf16 %v214, %v497
      %508 = vrot.lane.b32.xlu0 %v310, 77
      %v509 = vpop.permute.xlu0 %508
      %510 = vrot.lane.b32.xlu0 %v311, 77
      %v511 = vpop.permute.xlu0 %510
      %vm512 = vcmask 629760
      %v513 = vsel %vm512, %v509, %v511
      %v517 = vmul.bf16 %v211, %v509
      %v518 = vmul.bf16 %v212, %v513
      %v519 = vmul.bf16 %v213, %v511
      %522 = vrot.lane.b32.xlu0 %v324, 83
      %v523 = vpop.permute.xlu0 %522
      %524 = vrot.lane.b32.xlu0 %v325, 83
      %v525 = vpop.permute.xlu0 %524
      %vm526 = vcmask 678912
      %v527 = vsel %vm526, %v523, %v525
      %v531 = vmul.bf16 %v211, %v523
      %v532 = vmul.bf16 %v212, %v527
      %v533 = vmul.bf16 %v213, %v525
      %534 = vrot.lane.b32.xlu0 %v310, 125
      %v535 = vpop.permute.xlu0 %534
      %536 = vrot.lane.b32.xlu0 %v311, 125
      %v537 = vpop.permute.xlu0 %536
      %vm538 = vcmask 1022976
      %v539 = vsel %vm538, %v535, %v537
      %v543 = vmul.bf16 %v211, %v535
      %v544 = vmul.bf16 %v212, %v539
      %v545 = vmul.bf16 %v213, %v537
      %546 = vrot.lane.b32.xlu0 %v324, 3
      %v547 = vpop.permute.xlu0 %546
      %548 = vrot.lane.b32.xlu0 %v325, 3
      %v549 = vpop.permute.xlu0 %548
      %vm550 = vcmask 23552
      %v551 = vsel %vm550, %v547, %v549
      %v555 = vmul.bf16 %v212, %v547
      %v556 = vmul.bf16 %v213, %v551
      %v557 = vmul.bf16 %v214, %v549
      %558 = vrot.lane.b32.xlu0 %v310, 45
      %v559 = vpop.permute.xlu0 %558
      %560 = vrot.lane.b32.xlu0 %v311, 45
      %v561 = vpop.permute.xlu0 %560
      %vm562 = vcmask 367616
      %v563 = vsel %vm562, %v559, %v561
      %v567 = vmul.bf16 %v212, %v559
      %v568 = vmul.bf16 %v213, %v563
      %v569 = vmul.bf16 %v214, %v561
      %570 = vrot.lane.b32.xlu0 %v324, 51
      %v571 = vpop.permute.xlu0 %570
      %572 = vrot.lane.b32.xlu0 %v325, 51
      %v573 = vpop.permute.xlu0 %572
      %vm574 = vcmask 416768
      %v575 = vsel %vm574, %v571, %v573
      %v579 = vmul.bf16 %v212, %v571
      %v580 = vmul.bf16 %v213, %v575
      %v581 = vmul.bf16 %v214, %v573
      %584 = vrot.lane.b32.xlu0 %v338, 60
      %v585 = vpop.permute.xlu0 %584
      %586 = vrot.lane.b32.xlu0 %v339, 60
      %v587 = vpop.permute.xlu0 %586
      %vm588 = vcmask 490496
      %v589 = vsel %vm588, %v585, %v587
      %v593 = vmul.bf16 %v211, %v585
      %v594 = vmul.bf16 %v212, %v589
      %v595 = vmul.bf16 %v213, %v587
      %598 = vrot.lane.b32.xlu0 %v352, 68
      %v599 = vpop.permute.xlu0 %598
      %600 = vrot.lane.b32.xlu0 %v353, 68
      %v601 = vpop.permute.xlu0 %600
      %vm602 = vcmask 556032
      %v603 = vsel %vm602, %v599, %v601
      %v607 = vmul.bf16 %v211, %v599
      %v608 = vmul.bf16 %v212, %v603
      %v609 = vmul.bf16 %v213, %v601
      %610 = vrot.lane.b32.xlu0 %v338, 124
      %v611 = vpop.permute.xlu0 %610
      %612 = vrot.lane.b32.xlu0 %v339, 124
      %v613 = vpop.permute.xlu0 %612
      %vm614 = vcmask 1014784
      %v615 = vsel %vm614, %v611, %v613
      %v619 = vmul.bf16 %v211, %v611
      %v620 = vmul.bf16 %v212, %v615
      %v621 = vmul.bf16 %v213, %v613
      %622 = vrot.lane.b32.xlu0 %v352, 4
      %v623 = vpop.permute.xlu0 %622
      %624 = vrot.lane.b32.xlu0 %v353, 4
      %v625 = vpop.permute.xlu0 %624
      %vm626 = vcmask 31744
      %v627 = vsel %vm626, %v623, %v625
      %v631 = vmul.bf16 %v212, %v623
      %v632 = vmul.bf16 %v213, %v627
      %v633 = vmul.bf16 %v214, %v625
      %v634 = vmul.bf16 %v212, %v585
      %v635 = vmul.bf16 %v213, %v589
      %v636 = vmul.bf16 %v214, %v587
      %v637 = vmul.bf16 %v212, %v599
      %v638 = vmul.bf16 %v213, %v603
      %v639 = vmul.bf16 %v214, %v601
      %643 = vrot.lane.b32.xlu0 %v211, 127
      %v644 = vpop.permute.xlu0 %643
      %645 = vrot.lane.b32.xlu0 %v212, 127
      %v646 = vpop.permute.xlu0 %645
      %647 = vrot.lane.b32.xlu0 %v213, 127
      %v648 = vpop.permute.xlu0 %647
      %v649 = vsel %vm386, %v644, %v646
      %v650 = vsel %vm386, %v646, %v648
      %654 = vrot.lane.b32.xlu0 %v379, 126
      %v655 = vpop.permute.xlu0 %654
      %656 = vrot.lane.b32.xlu0 %v380, 126
      %v657 = vpop.permute.xlu0 %656
      %658 = vrot.lane.b32.xlu0 %v381, 126
      %v659 = vpop.permute.xlu0 %658
      %v660 = vsel %vm462, %v655, %v657
      %v661 = vsel %vm462, %v657, %v659
      %665 = vrot.lane.b32.xlu0 %v391, 112
      %v666 = vpop.permute.xlu0 %665
      %667 = vrot.lane.b32.xlu0 %v392, 112
      %v668 = vpop.permute.xlu0 %667
      %669 = vrot.lane.b32.xlu0 %v393, 112
      %v670 = vpop.permute.xlu0 %669
      %vm671 = vcmask 916480
      %v672 = vsel %vm671, %v666, %v668
      %v673 = vsel %vm671, %v668, %v670
      %674 = vrot.lane.b32.xlu0 %v212, 111
      %v675 = vpop.permute.xlu0 %674
      %676 = vrot.lane.b32.xlu0 %v213, 111
      %v677 = vpop.permute.xlu0 %676
      %v678 = vsel %vm360, %v675, %v677
      %682 = vrot.lane.b32.xlu0 %v403, 110
      %v683 = vpop.permute.xlu0 %682
      %684 = vrot.lane.b32.xlu0 %v404, 110
      %v685 = vpop.permute.xlu0 %684
      %686 = vrot.lane.b32.xlu0 %v405, 110
      %v687 = vpop.permute.xlu0 %686
      %vm688 = vcmask 900096
      %v689 = vsel %vm688, %v683, %v685
      %v690 = vsel %vm688, %v685, %v687
      %694 = vrot.lane.b32.xlu0 %v415, 96
      %v695 = vpop.permute.xlu0 %694
      %696 = vrot.lane.b32.xlu0 %v416, 96
      %v697 = vpop.permute.xlu0 %696
      %698 = vrot.lane.b32.xlu0 %v417, 96
      %v699 = vpop.permute.xlu0 %698
      %vm700 = vcmask 785408
      %v701 = vsel %vm700, %v695, %v697
      %v702 = vsel %vm700, %v697, %v699
      %704 = vrot.lane.b32.xlu0 %v212, 95
      %v705 = vpop.permute.xlu0 %704
      %706 = vrot.lane.b32.xlu0 %v213, 95
      %v707 = vpop.permute.xlu0 %706
      %708 = vrot.lane.b32.xlu0 %v214, 95
      %v709 = vpop.permute.xlu0 %708
      %vm710 = vcmask 777216
      %v711 = vsel %vm710, %v705, %v707
      %v712 = vsel %vm710, %v707, %v709
      %716 = vrot.lane.b32.xlu0 %v427, 94
      %v717 = vpop.permute.xlu0 %716
      %718 = vrot.lane.b32.xlu0 %v428, 94
      %v719 = vpop.permute.xlu0 %718
      %720 = vrot.lane.b32.xlu0 %v429, 94
      %v721 = vpop.permute.xlu0 %720
      %v722 = vsel %vm436, %v717, %v719
      %v723 = vsel %vm436, %v719, %v721
      %727 = vrot.lane.b32.xlu0 %v441, 17
      %v728 = vpop.permute.xlu0 %727
      %729 = vrot.lane.b32.xlu0 %v442, 17
      %v730 = vpop.permute.xlu0 %729
      %731 = vrot.lane.b32.xlu0 %v443, 17
      %v732 = vpop.permute.xlu0 %731
      %v733 = vsel %vm422, %v728, %v730
      %v734 = vsel %vm422, %v730, %v732
      %735 = vrot.lane.b32.xlu0 %v211, 15
      %v736 = vpop.permute.xlu0 %735
      %737 = vrot.lane.b32.xlu0 %v212, 15
      %v738 = vpop.permute.xlu0 %737
      %739 = vrot.lane.b32.xlu0 %v213, 15
      %v740 = vpop.permute.xlu0 %739
      %v741 = vsel %vm410, %v736, %v738
      %v742 = vsel %vm410, %v738, %v740
      %746 = vrot.lane.b32.xlu0 %v455, 13
      %v747 = vpop.permute.xlu0 %746
      %748 = vrot.lane.b32.xlu0 %v456, 13
      %v749 = vpop.permute.xlu0 %748
      %750 = vrot.lane.b32.xlu0 %v457, 13
      %v751 = vpop.permute.xlu0 %750
      %vm752 = vcmask 105472
      %v753 = vsel %vm752, %v747, %v749
      %v754 = vsel %vm752, %v749, %v751
      %758 = vrot.lane.b32.xlu0 %v467, 113
      %v759 = vpop.permute.xlu0 %758
      %760 = vrot.lane.b32.xlu0 %v468, 113
      %v761 = vpop.permute.xlu0 %760
      %762 = vrot.lane.b32.xlu0 %v469, 113
      %v763 = vpop.permute.xlu0 %762
      %v764 = vsel %vm374, %v759, %v761
      %v765 = vsel %vm374, %v761, %v763
      %769 = vrot.lane.b32.xlu0 %v479, 109
      %v770 = vpop.permute.xlu0 %769
      %771 = vrot.lane.b32.xlu0 %v480, 109
      %v772 = vpop.permute.xlu0 %771
      %773 = vrot.lane.b32.xlu0 %v481, 109
      %v774 = vpop.permute.xlu0 %773
      %vm775 = vcmask 891904
      %v776 = vsel %vm775, %v770, %v772
      %v777 = vsel %vm775, %v772, %v774
      %781 = vrot.lane.b32.xlu0 %v491, 81
      %v782 = vpop.permute.xlu0 %781
      %783 = vrot.lane.b32.xlu0 %v492, 81
      %v784 = vpop.permute.xlu0 %783
      %785 = vrot.lane.b32.xlu0 %v493, 81
      %v786 = vpop.permute.xlu0 %785
      %vm787 = vcmask 662528
      %v788 = vsel %vm787, %v782, %v784
      %v789 = vsel %vm787, %v784, %v786
      %793 = vrot.lane.b32.xlu0 %v503, 126
      %v794 = vpop.permute.xlu0 %793
      %795 = vrot.lane.b32.xlu0 %v504, 126
      %v796 = vpop.permute.xlu0 %795
      %797 = vrot.lane.b32.xlu0 %v505, 126
      %v798 = vpop.permute.xlu0 %797
      %v799 = vsel %vm462, %v794, %v796
      %v800 = vsel %vm462, %v796, %v798
      %804 = vrot.lane.b32.xlu0 %v517, 83
      %v805 = vpop.permute.xlu0 %804
      %806 = vrot.lane.b32.xlu0 %v518, 83
      %v807 = vpop.permute.xlu0 %806
      %808 = vrot.lane.b32.xlu0 %v519, 83
      %v809 = vpop.permute.xlu0 %808
      %v810 = vsel %vm526, %v805, %v807
      %v811 = vsel %vm526, %v807, %v809
      %812 = vrot.lane.b32.xlu0 %v211, 80
      %v813 = vpop.permute.xlu0 %812
      %814 = vrot.lane.b32.xlu0 %v212, 80
      %v815 = vpop.permute.xlu0 %814
      %816 = vrot.lane.b32.xlu0 %v213, 80
      %v817 = vpop.permute.xlu0 %816
      %vm818 = vcmask 654336
      %v819 = vsel %vm818, %v813, %v815
      %v820 = vsel %vm818, %v815, %v817
      %824 = vrot.lane.b32.xlu0 %v531, 77
      %v825 = vpop.permute.xlu0 %824
      %826 = vrot.lane.b32.xlu0 %v532, 77
      %v827 = vpop.permute.xlu0 %826
      %828 = vrot.lane.b32.xlu0 %v533, 77
      %v829 = vpop.permute.xlu0 %828
      %v830 = vsel %vm512, %v825, %v827
      %v831 = vsel %vm512, %v827, %v829
      %835 = vrot.lane.b32.xlu0 %v543, 35
      %v836 = vpop.permute.xlu0 %835
      %837 = vrot.lane.b32.xlu0 %v544, 35
      %v838 = vpop.permute.xlu0 %837
      %839 = vrot.lane.b32.xlu0 %v545, 35
      %v840 = vpop.permute.xlu0 %839
      %vm841 = vcmask 285696
      %v842 = vsel %vm841, %v836, %v838
      %v843 = vsel %vm841, %v838, %v840
      %844 = vrot.lane.b32.xlu0 %v212, 32
      %v845 = vpop.permute.xlu0 %844
      %846 = vrot.lane.b32.xlu0 %v213, 32
      %v847 = vpop.permute.xlu0 %846
      %vm848 = vcmask 261120
      %v849 = vsel %vm848, %v845, %v847
      %853 = vrot.lane.b32.xlu0 %v555, 29
      %v854 = vpop.permute.xlu0 %853
      %855 = vrot.lane.b32.xlu0 %v556, 29
      %v856 = vpop.permute.xlu0 %855
      %857 = vrot.lane.b32.xlu0 %v557, 29
      %v858 = vpop.permute.xlu0 %857
      %vm859 = vcmask 236544
      %v860 = vsel %vm859, %v854, %v856
      %v861 = vsel %vm859, %v856, %v858
      %865 = vrot.lane.b32.xlu0 %v567, 115
      %v866 = vpop.permute.xlu0 %865
      %867 = vrot.lane.b32.xlu0 %v568, 115
      %v868 = vpop.permute.xlu0 %867
      %869 = vrot.lane.b32.xlu0 %v569, 115
      %v870 = vpop.permute.xlu0 %869
      %vm871 = vcmask 941056
      %v872 = vsel %vm871, %v866, %v868
      %v873 = vsel %vm871, %v868, %v870
      %874 = vrot.lane.b32.xlu0 %v212, 112
      %v875 = vpop.permute.xlu0 %874
      %876 = vrot.lane.b32.xlu0 %v213, 112
      %v877 = vpop.permute.xlu0 %876
      %878 = vrot.lane.b32.xlu0 %v214, 112
      %v879 = vpop.permute.xlu0 %878
      %v880 = vsel %vm671, %v875, %v877
      %v881 = vsel %vm671, %v877, %v879
      %885 = vrot.lane.b32.xlu0 %v579, 109
      %v886 = vpop.permute.xlu0 %885
      %887 = vrot.lane.b32.xlu0 %v580, 109
      %v888 = vpop.permute.xlu0 %887
      %889 = vrot.lane.b32.xlu0 %v581, 109
      %v890 = vpop.permute.xlu0 %889
      %v891 = vsel %vm775, %v886, %v888
      %v892 = vsel %vm775, %v888, %v890
      %896 = vrot.lane.b32.xlu0 %v593, 100
      %v897 = vpop.permute.xlu0 %896
      %898 = vrot.lane.b32.xlu0 %v594, 100
      %v899 = vpop.permute.xlu0 %898
      %900 = vrot.lane.b32.xlu0 %v595, 100
      %v901 = vpop.permute.xlu0 %900
      %vm902 = vcmask 818176
      %v903 = vsel %vm902, %v897, %v899
      %v904 = vsel %vm902, %v899, %v901
      %905 = vrot.lane.b32.xlu0 %v211, 96
      %v906 = vpop.permute.xlu0 %905
      %907 = vrot.lane.b32.xlu0 %v212, 96
      %v908 = vpop.permute.xlu0 %907
      %909 = vrot.lane.b32.xlu0 %v213, 96
      %v910 = vpop.permute.xlu0 %909
      %v911 = vsel %vm700, %v906, %v908
      %v912 = vsel %vm700, %v908, %v910
      %916 = vrot.lane.b32.xlu0 %v607, 92
      %v917 = vpop.permute.xlu0 %916
      %918 = vrot.lane.b32.xlu0 %v608, 92
      %v919 = vpop.permute.xlu0 %918
      %920 = vrot.lane.b32.xlu0 %v609, 92
      %v921 = vpop.permute.xlu0 %920
      %vm922 = vcmask 752640
      %v923 = vsel %vm922, %v917, %v919
      %v924 = vsel %vm922, %v919, %v921
      %928 = vrot.lane.b32.xlu0 %v619, 36
      %v929 = vpop.permute.xlu0 %928
      %930 = vrot.lane.b32.xlu0 %v620, 36
      %v931 = vpop.permute.xlu0 %930
      %932 = vrot.lane.b32.xlu0 %v621, 36
      %v933 = vpop.permute.xlu0 %932
      %vm934 = vcmask 293888
      %v935 = vsel %vm934, %v929, %v931
      %v936 = vsel %vm934, %v931, %v933
      %940 = vrot.lane.b32.xlu0 %v634, 72
      %v941 = vpop.permute.xlu0 %940
      %942 = vrot.lane.b32.xlu0 %v635, 72
      %v943 = vpop.permute.xlu0 %942
      %944 = vrot.lane.b32.xlu0 %v636, 72
      %v945 = vpop.permute.xlu0 %944
      %vm946 = vcmask 588800
      %v947 = vsel %vm946, %v941, %v943
      %v948 = vsel %vm946, %v943, %v945
      %949 = vrot.lane.b32.xlu0 %v212, 68
      %v950 = vpop.permute.xlu0 %949
      %951 = vrot.lane.b32.xlu0 %v213, 68
      %v952 = vpop.permute.xlu0 %951
      %953 = vrot.lane.b32.xlu0 %v214, 68
      %v954 = vpop.permute.xlu0 %953
      %v955 = vsel %vm602, %v950, %v952
      %v956 = vsel %vm602, %v952, %v954
      %960 = vrot.lane.b32.xlu0 %v637, 64
      %v961 = vpop.permute.xlu0 %960
      %962 = vrot.lane.b32.xlu0 %v638, 64
      %v963 = vpop.permute.xlu0 %962
      %964 = vrot.lane.b32.xlu0 %v639, 64
      %v965 = vpop.permute.xlu0 %964
      %vm966 = vcmask 523264
      %v967 = vsel %vm966, %v961, %v963
      %v968 = vsel %vm966, %v963, %v965
      %969 = vrot.lane.b32.xlu0 %v212, 79
      %v970 = vpop.permute.xlu0 %969
      %971 = vrot.lane.b32.xlu0 %v213, 79
      %v972 = vpop.permute.xlu0 %971
      %973 = vrot.lane.b32.xlu0 %v214, 79
      %v974 = vpop.permute.xlu0 %973
      %975 = vrot.lane.b32.xlu0 %v799, 79
      %v976 = vpop.permute.xlu0 %975
      %977 = vrot.lane.b32.xlu0 %v800, 79
      %v978 = vpop.permute.xlu0 %977
      %979 = vrot.lane.b32.xlu0 %v798, 79
      %v980 = vpop.permute.xlu0 %979
      %981 = vrot.lane.b32.xlu0 %v810, 79
      %v982 = vpop.permute.xlu0 %981
      %983 = vrot.lane.b32.xlu0 %v811, 79
      %v984 = vpop.permute.xlu0 %983
      %985 = vrot.lane.b32.xlu0 %v809, 79
      %v986 = vpop.permute.xlu0 %985
      %987 = vrot.lane.b32.xlu0 %v819, 79
      %v988 = vpop.permute.xlu0 %987
      %989 = vrot.lane.b32.xlu0 %v820, 79
      %v990 = vpop.permute.xlu0 %989
      %991 = vrot.lane.b32.xlu0 %v817, 79
      %v992 = vpop.permute.xlu0 %991
      %993 = vrot.lane.b32.xlu0 %v830, 79
      %v994 = vpop.permute.xlu0 %993
      %995 = vrot.lane.b32.xlu0 %v831, 79
      %v996 = vpop.permute.xlu0 %995
      %997 = vrot.lane.b32.xlu0 %v829, 79
      %v998 = vpop.permute.xlu0 %997
      %999 = vrot.lane.b32.xlu0 %v842, 79
      %v1000 = vpop.permute.xlu0 %999
      %1001 = vrot.lane.b32.xlu0 %v843, 79
      %v1002 = vpop.permute.xlu0 %1001
      %1003 = vrot.lane.b32.xlu0 %v840, 79
      %v1004 = vpop.permute.xlu0 %1003
      %1005 = vrot.lane.b32.xlu0 %v845, 79
      %v1006 = vpop.permute.xlu0 %1005
      %1007 = vrot.lane.b32.xlu0 %v849, 79
      %v1008 = vpop.permute.xlu0 %1007
      %1009 = vrot.lane.b32.xlu0 %v847, 79
      %v1010 = vpop.permute.xlu0 %1009
      %1011 = vrot.lane.b32.xlu0 %v854, 79
      %v1012 = vpop.permute.xlu0 %1011
      %1013 = vrot.lane.b32.xlu0 %v860, 79
      %v1014 = vpop.permute.xlu0 %1013
      %1015 = vrot.lane.b32.xlu0 %v861, 79
      %v1016 = vpop.permute.xlu0 %1015
      %1017 = vrot.lane.b32.xlu0 %v872, 79
      %v1018 = vpop.permute.xlu0 %1017
      %1019 = vrot.lane.b32.xlu0 %v873, 79
      %v1020 = vpop.permute.xlu0 %1019
      %1021 = vrot.lane.b32.xlu0 %v870, 79
      %v1022 = vpop.permute.xlu0 %1021
      %1023 = vrot.lane.b32.xlu0 %v880, 79
      %v1024 = vpop.permute.xlu0 %1023
      %1025 = vrot.lane.b32.xlu0 %v881, 79
      %v1026 = vpop.permute.xlu0 %1025
      %1027 = vrot.lane.b32.xlu0 %v879, 79
      %v1028 = vpop.permute.xlu0 %1027
      %1029 = vrot.lane.b32.xlu0 %v891, 79
      %v1030 = vpop.permute.xlu0 %1029
      %1031 = vrot.lane.b32.xlu0 %v892, 79
      %v1032 = vpop.permute.xlu0 %1031
      %1033 = vrot.lane.b32.xlu0 %v890, 79
      %v1034 = vpop.permute.xlu0 %1033
      %1035 = vrot.lane.b32.xlu0 %v903, 79
      %v1036 = vpop.permute.xlu0 %1035
      %1037 = vrot.lane.b32.xlu0 %v904, 79
      %v1038 = vpop.permute.xlu0 %1037
      %1039 = vrot.lane.b32.xlu0 %v901, 79
      %v1040 = vpop.permute.xlu0 %1039
      %1041 = vrot.lane.b32.xlu0 %v911, 79
      %v1042 = vpop.permute.xlu0 %1041
      %1043 = vrot.lane.b32.xlu0 %v912, 79
      %v1044 = vpop.permute.xlu0 %1043
      %1045 = vrot.lane.b32.xlu0 %v910, 79
      %v1046 = vpop.permute.xlu0 %1045
      %1047 = vrot.lane.b32.xlu0 %v923, 79
      %v1048 = vpop.permute.xlu0 %1047
      %1049 = vrot.lane.b32.xlu0 %v924, 79
      %v1050 = vpop.permute.xlu0 %1049
      %1051 = vrot.lane.b32.xlu0 %v921, 79
      %v1052 = vpop.permute.xlu0 %1051
      %1053 = vrot.lane.b32.xlu0 %v935, 79
      %v1054 = vpop.permute.xlu0 %1053
      %1055 = vrot.lane.b32.xlu0 %v936, 79
      %v1056 = vpop.permute.xlu0 %1055
      %1057 = vrot.lane.b32.xlu0 %v933, 79
      %v1058 = vpop.permute.xlu0 %1057
      %vm1059 = vcmask 646144
      %v1060 = vsel %vm1059, %v970, %v972
      %v1061 = vsel %vm1059, %v972, %v974
      %v1062 = vsel %vm1059, %v976, %v978
      %v1063 = vsel %vm1059, %v978, %v980
      %v1064 = vsel %vm1059, %v982, %v984
      %v1065 = vsel %vm1059, %v984, %v986
      %v1066 = vsel %vm1059, %v988, %v990
      %v1067 = vsel %vm1059, %v990, %v992
      %v1068 = vsel %vm1059, %v994, %v996
      %v1069 = vsel %vm1059, %v996, %v998
      %v1070 = vsel %vm1059, %v1000, %v1002
      %v1071 = vsel %vm1059, %v1002, %v1004
      %v1072 = vsel %vm1059, %v1006, %v1008
      %v1073 = vsel %vm1059, %v1008, %v1010
      %v1074 = vsel %vm1059, %v1012, %v1014
      %v1075 = vsel %vm1059, %v1014, %v1016
      %v1076 = vsel %vm1059, %v1018, %v1020
      %v1077 = vsel %vm1059, %v1020, %v1022
      %v1078 = vsel %vm1059, %v1024, %v1026
      %v1079 = vsel %vm1059, %v1026, %v1028
      %v1080 = vsel %vm1059, %v1030, %v1032
      %v1081 = vsel %vm1059, %v1032, %v1034
      %v1082 = vsel %vm1059, %v1036, %v1038
      %v1083 = vsel %vm1059, %v1038, %v1040
      %v1084 = vsel %vm1059, %v1042, %v1044
      %v1085 = vsel %vm1059, %v1044, %v1046
      %v1086 = vsel %vm1059, %v1048, %v1050
      %v1087 = vsel %vm1059, %v1050, %v1052
      %v1088 = vsel %vm1059, %v1054, %v1056
      %v1089 = vsel %vm1059, %v1056, %v1058
      %1093 = vrot.lane.b32.xlu0 %v631, 107
      %v1094 = vpop.permute.xlu0 %1093
      %1095 = vrot.lane.b32.xlu0 %v632, 107
      %v1096 = vpop.permute.xlu0 %1095
      %1097 = vrot.lane.b32.xlu0 %v633, 107
      %v1098 = vpop.permute.xlu0 %1097
      %1099 = vrot.lane.b32.xlu0 %v947, 107
      %v1100 = vpop.permute.xlu0 %1099
      %1101 = vrot.lane.b32.xlu0 %v948, 107
      %v1102 = vpop.permute.xlu0 %1101
      %1103 = vrot.lane.b32.xlu0 %v945, 107
      %v1104 = vpop.permute.xlu0 %1103
      %1105 = vrot.lane.b32.xlu0 %v955, 107
      %v1106 = vpop.permute.xlu0 %1105
      %1107 = vrot.lane.b32.xlu0 %v956, 107
      %v1108 = vpop.permute.xlu0 %1107
      %1109 = vrot.lane.b32.xlu0 %v954, 107
      %v1110 = vpop.permute.xlu0 %1109
      %1111 = vrot.lane.b32.xlu0 %v967, 107
      %v1112 = vpop.permute.xlu0 %1111
      %1113 = vrot.lane.b32.xlu0 %v968, 107
      %v1114 = vpop.permute.xlu0 %1113
      %1115 = vrot.lane.b32.xlu0 %v965, 107
      %v1116 = vpop.permute.xlu0 %1115
      %vm1117 = vcmask 875520
      %v1118 = vsel %vm1117, %v1094, %v1096
      %v1119 = vsel %vm1117, %v1096, %v1098
      %v1120 = vsel %vm1117, %v1100, %v1102
      %v1121 = vsel %vm1117, %v1102, %v1104
      %v1122 = vsel %vm1117, %v1106, %v1108
      %v1123 = vsel %vm1117, %v1108, %v1110
      %v1124 = vsel %vm1117, %v1112, %v1114
      %v1125 = vsel %vm1117, %v1114, %v1116
      %v1126 = vld [vmem:[%s1] sm:$0xff]
      %v1127 = vld [vmem:[%s1 + $0x8] sm:$0xff]
      %v1128 = vld [vmem:[%s1 + $0x10] sm:$0xf]
      %v1129 = vld [vmem:[%s2] sm:$0xff]
      %1131 = vset.pattern.permute.xlu0 0
      %1132 = vperm.xlu0 %1131, %v1129
      %v1133 = vpop.permute.xlu0 %1132
      %v1138 = vunpack.c.l.b16 %v1126
      %v1139 = vunpack.c.h.b16 %v1126
      %v1140 = vunpack.c.l.b16 %v1127
      %v1141 = vunpack.c.h.b16 %v1127
      %v1142 = vunpack.c.l.b16 %v1128
      %v1143 = vpack.c.b16 %v1138, %v1138
      %v1144 = vpack.c.b16 %v1139, %v1139
      %v1145 = vpack.c.b16 %v1140, %v1140
      %v1146 = vpack.c.b16 %v1141, %v1141
      %v1147 = vpack.c.b16 %v1142, %v1142
      %1155 = vrot.lane.b32.xlu0 %v365, 17
      %v1156 = vpop.permute.xlu0 %1155
      %1157 = vrot.lane.b32.xlu0 %v366, 17
      %v1158 = vpop.permute.xlu0 %1157
      %1159 = vrot.lane.b32.xlu0 %v367, 17
      %v1160 = vpop.permute.xlu0 %1159
      %1161 = vrot.lane.b32.xlu0 %v649, 17
      %v1162 = vpop.permute.xlu0 %1161
      %1163 = vrot.lane.b32.xlu0 %v650, 17
      %v1164 = vpop.permute.xlu0 %1163
      %1165 = vrot.lane.b32.xlu0 %v648, 17
      %v1166 = vpop.permute.xlu0 %1165
      %1167 = vrot.lane.b32.xlu0 %v660, 17
      %v1168 = vpop.permute.xlu0 %1167
      %1169 = vrot.lane.b32.xlu0 %v661, 17
      %v1170 = vpop.permute.xlu0 %1169
      %1171 = vrot.lane.b32.xlu0 %v659, 17
      %v1172 = vpop.permute.xlu0 %1171
      %1173 = vrot.lane.b32.xlu0 %v672, 17
      %v1174 = vpop.permute.xlu0 %1173
      %1175 = vrot.lane.b32.xlu0 %v673, 17
      %v1176 = vpop.permute.xlu0 %1175
      %1177 = vrot.lane.b32.xlu0 %v670, 17
      %v1178 = vpop.permute.xlu0 %1177
      %1179 = vrot.lane.b32.xlu0 %v675, 17
      %v1180 = vpop.permute.xlu0 %1179
      %1181 = vrot.lane.b32.xlu0 %v678, 17
      %v1182 = vpop.permute.xlu0 %1181
      %1183 = vrot.lane.b32.xlu0 %v677, 17
      %v1184 = vpop.permute.xlu0 %1183
      %1185 = vrot.lane.b32.xlu0 %v683, 17
      %v1186 = vpop.permute.xlu0 %1185
      %1187 = vrot.lane.b32.xlu0 %v689, 17
      %v1188 = vpop.permute.xlu0 %1187
      %1189 = vrot.lane.b32.xlu0 %v690, 17
      %v1190 = vpop.permute.xlu0 %1189
      %1191 = vrot.lane.b32.xlu0 %v695, 17
      %v1192 = vpop.permute.xlu0 %1191
      %1193 = vrot.lane.b32.xlu0 %v701, 17
      %v1194 = vpop.permute.xlu0 %1193
      %1195 = vrot.lane.b32.xlu0 %v702, 17
      %v1196 = vpop.permute.xlu0 %1195
      %1197 = vrot.lane.b32.xlu0 %v705, 17
      %v1198 = vpop.permute.xlu0 %1197
      %1199 = vrot.lane.b32.xlu0 %v711, 17
      %v1200 = vpop.permute.xlu0 %1199
      %1201 = vrot.lane.b32.xlu0 %v712, 17
      %v1202 = vpop.permute.xlu0 %1201
      %1203 = vrot.lane.b32.xlu0 %v717, 17
      %v1204 = vpop.permute.xlu0 %1203
      %1205 = vrot.lane.b32.xlu0 %v722, 17
      %v1206 = vpop.permute.xlu0 %1205
      %1207 = vrot.lane.b32.xlu0 %v723, 17
      %v1208 = vpop.permute.xlu0 %1207
      %1209 = vrot.lane.b32.xlu0 %v728, 17
      %v1210 = vpop.permute.xlu0 %1209
      %1211 = vrot.lane.b32.xlu0 %v733, 17
      %v1212 = vpop.permute.xlu0 %1211
      %1213 = vrot.lane.b32.xlu0 %v734, 17
      %v1214 = vpop.permute.xlu0 %1213
      %1215 = vrot.lane.b32.xlu0 %v736, 17
      %v1216 = vpop.permute.xlu0 %1215
      %1217 = vrot.lane.b32.xlu0 %v741, 17
      %v1218 = vpop.permute.xlu0 %1217
      %1219 = vrot.lane.b32.xlu0 %v742, 17
      %v1220 = vpop.permute.xlu0 %1219
      %1221 = vrot.lane.b32.xlu0 %v747, 17
      %v1222 = vpop.permute.xlu0 %1221
      %1223 = vrot.lane.b32.xlu0 %v753, 17
      %v1224 = vpop.permute.xlu0 %1223
      %1225 = vrot.lane.b32.xlu0 %v754, 17
      %v1226 = vpop.permute.xlu0 %1225
      %1227 = vrot.lane.b32.xlu0 %v764, 17
      %v1228 = vpop.permute.xlu0 %1227
      %1229 = vrot.lane.b32.xlu0 %v765, 17
      %v1230 = vpop.permute.xlu0 %1229
      %1231 = vrot.lane.b32.xlu0 %v763, 17
      %v1232 = vpop.permute.xlu0 %1231
      %1233 = vrot.lane.b32.xlu0 %v770, 17
      %v1234 = vpop.permute.xlu0 %1233
      %1235 = vrot.lane.b32.xlu0 %v776, 17
      %v1236 = vpop.permute.xlu0 %1235
      %1237 = vrot.lane.b32.xlu0 %v777, 17
      %v1238 = vpop.permute.xlu0 %1237
      %1239 = vrot.lane.b32.xlu0 %v782, 17
      %v1240 = vpop.permute.xlu0 %1239
      %1241 = vrot.lane.b32.xlu0 %v788, 17
      %v1242 = vpop.permute.xlu0 %1241
      %1243 = vrot.lane.b32.xlu0 %v789, 17
      %v1244 = vpop.permute.xlu0 %1243
      %1245 = vrot.lane.b32.xlu0 %v970, 17
      %v1246 = vpop.permute.xlu0 %1245
      %1247 = vrot.lane.b32.xlu0 %v1060, 17
      %v1248 = vpop.permute.xlu0 %1247
      %1249 = vrot.lane.b32.xlu0 %v1061, 17
      %v1250 = vpop.permute.xlu0 %1249
      %1251 = vrot.lane.b32.xlu0 %v976, 17
      %v1252 = vpop.permute.xlu0 %1251
      %1253 = vrot.lane.b32.xlu0 %v1062, 17
      %v1254 = vpop.permute.xlu0 %1253
      %1255 = vrot.lane.b32.xlu0 %v1063, 17
      %v1256 = vpop.permute.xlu0 %1255
      %1257 = vrot.lane.b32.xlu0 %v982, 17
      %v1258 = vpop.permute.xlu0 %1257
      %1259 = vrot.lane.b32.xlu0 %v1064, 17
      %v1260 = vpop.permute.xlu0 %1259
      %1261 = vrot.lane.b32.xlu0 %v1065, 17
      %v1262 = vpop.permute.xlu0 %1261
      %1263 = vrot.lane.b32.xlu0 %v988, 17
      %v1264 = vpop.permute.xlu0 %1263
      %1265 = vrot.lane.b32.xlu0 %v1066, 17
      %v1266 = vpop.permute.xlu0 %1265
      %1267 = vrot.lane.b32.xlu0 %v1067, 17
      %v1268 = vpop.permute.xlu0 %1267
      %1269 = vrot.lane.b32.xlu0 %v994, 17
      %v1270 = vpop.permute.xlu0 %1269
      %1271 = vrot.lane.b32.xlu0 %v1068, 17
      %v1272 = vpop.permute.xlu0 %1271
      %1273 = vrot.lane.b32.xlu0 %v1069, 17
      %v1274 = vpop.permute.xlu0 %1273
      %1275 = vrot.lane.b32.xlu0 %v1000, 17
      %v1276 = vpop.permute.xlu0 %1275
      %1277 = vrot.lane.b32.xlu0 %v1070, 17
      %v1278 = vpop.permute.xlu0 %1277
      %1279 = vrot.lane.b32.xlu0 %v1071, 17
      %v1280 = vpop.permute.xlu0 %1279
      %1281 = vrot.lane.b32.xlu0 %v1006, 17
      %v1282 = vpop.permute.xlu0 %1281
      %1283 = vrot.lane.b32.xlu0 %v1072, 17
      %v1284 = vpop.permute.xlu0 %1283
      %1285 = vrot.lane.b32.xlu0 %v1073, 17
      %v1286 = vpop.permute.xlu0 %1285
      %1287 = vrot.lane.b32.xlu0 %v1012, 17
      %v1288 = vpop.permute.xlu0 %1287
      %1289 = vrot.lane.b32.xlu0 %v1074, 17
      %v1290 = vpop.permute.xlu0 %1289
      %1291 = vrot.lane.b32.xlu0 %v1075, 17
      %v1292 = vpop.permute.xlu0 %1291
      %1293 = vrot.lane.b32.xlu0 %v1018, 17
      %v1294 = vpop.permute.xlu0 %1293
      %1295 = vrot.lane.b32.xlu0 %v1076, 17
      %v1296 = vpop.permute.xlu0 %1295
      %1297 = vrot.lane.b32.xlu0 %v1077, 17
      %v1298 = vpop.permute.xlu0 %1297
      %1299 = vrot.lane.b32.xlu0 %v1024, 17
      %v1300 = vpop.permute.xlu0 %1299
      %1301 = vrot.lane.b32.xlu0 %v1078, 17
      %v1302 = vpop.permute.xlu0 %1301
      %1303 = vrot.lane.b32.xlu0 %v1079, 17
      %v1304 = vpop.permute.xlu0 %1303
      %1305 = vrot.lane.b32.xlu0 %v1030, 17
      %v1306 = vpop.permute.xlu0 %1305
      %1307 = vrot.lane.b32.xlu0 %v1080, 17
      %v1308 = vpop.permute.xlu0 %1307
      %1309 = vrot.lane.b32.xlu0 %v1081, 17
      %v1310 = vpop.permute.xlu0 %1309
      %1311 = vrot.lane.b32.xlu0 %v1036, 17
      %v1312 = vpop.permute.xlu0 %1311
      %1313 = vrot.lane.b32.xlu0 %v1082, 17
      %v1314 = vpop.permute.xlu0 %1313
      %1315 = vrot.lane.b32.xlu0 %v1083, 17
      %v1316 = vpop.permute.xlu0 %1315
      %1317 = vrot.lane.b32.xlu0 %v1042, 17
      %v1318 = vpop.permute.xlu0 %1317
      %1319 = vrot.lane.b32.xlu0 %v1084, 17
      %v1320 = vpop.permute.xlu0 %1319
      %1321 = vrot.lane.b32.xlu0 %v1085, 17
      %v1322 = vpop.permute.xlu0 %1321
      %1323 = vrot.lane.b32.xlu0 %v1048, 17
      %v1324 = vpop.permute.xlu0 %1323
      %1325 = vrot.lane.b32.xlu0 %v1086, 17
      %v1326 = vpop.permute.xlu0 %1325
      %1327 = vrot.lane.b32.xlu0 %v1087, 17
      %v1328 = vpop.permute.xlu0 %1327
      %1329 = vrot.lane.b32.xlu0 %v1054, 17
      %v1330 = vpop.permute.xlu0 %1329
      %1331 = vrot.lane.b32.xlu0 %v1088, 17
      %v1332 = vpop.permute.xlu0 %1331
      %1333 = vrot.lane.b32.xlu0 %v1089, 17
      %v1334 = vpop.permute.xlu0 %1333
      %1335 = vrot.lane.b32.xlu0 %v1094, 17
      %v1336 = vpop.permute.xlu0 %1335
      %1337 = vrot.lane.b32.xlu0 %v1118, 17
      %v1338 = vpop.permute.xlu0 %1337
      %1339 = vrot.lane.b32.xlu0 %v1119, 17
      %v1340 = vpop.permute.xlu0 %1339
      %1341 = vrot.lane.b32.xlu0 %v1100, 17
      %v1342 = vpop.permute.xlu0 %1341
      %1343 = vrot.lane.b32.xlu0 %v1120, 17
      %v1344 = vpop.permute.xlu0 %1343
      %1345 = vrot.lane.b32.xlu0 %v1121, 17
      %v1346 = vpop.permute.xlu0 %1345
      %1347 = vrot.lane.b32.xlu0 %v1106, 17
      %v1348 = vpop.permute.xlu0 %1347
      %1349 = vrot.lane.b32.xlu0 %v1122, 17
      %v1350 = vpop.permute.xlu0 %1349
      %1351 = vrot.lane.b32.xlu0 %v1123, 17
      %v1352 = vpop.permute.xlu0 %1351
      %1353 = vrot.lane.b32.xlu0 %v1112, 17
      %v1354 = vpop.permute.xlu0 %1353
      %1355 = vrot.lane.b32.xlu0 %v1124, 17
      %v1356 = vpop.permute.xlu0 %1355
      %1357 = vrot.lane.b32.xlu0 %v1125, 17
      %v1358 = vpop.permute.xlu0 %1357
      %v1359 = vsel %vm422, %v1156, %v1158
      %v1360 = vsel %vm422, %v1158, %v1160
      %v1361 = vsel %vm422, %v1162, %v1164
      %v1362 = vsel %vm422, %v1164, %v1166
      %v1363 = vsel %vm422, %v1168, %v1170
      %v1364 = vsel %vm422, %v1170, %v1172
      %v1365 = vsel %vm422, %v1174, %v1176
      %v1366 = vsel %vm422, %v1176, %v1178
      %v1367 = vsel %vm422, %v1180, %v1182
      %v1368 = vsel %vm422, %v1182, %v1184
      %v1369 = vsel %vm422, %v1186, %v1188
      %v1370 = vsel %vm422, %v1188, %v1190
      %v1371 = vsel %vm422, %v1192, %v1194
      %v1372 = vsel %vm422, %v1194, %v1196
      %v1373 = vsel %vm422, %v1198, %v1200
      %v1374 = vsel %vm422, %v1200, %v1202
      %v1375 = vsel %vm422, %v1204, %v1206
      %v1376 = vsel %vm422, %v1206, %v1208
      %v1377 = vsel %vm422, %v1210, %v1212
      %v1378 = vsel %vm422, %v1212, %v1214
      %v1379 = vsel %vm422, %v1216, %v1218
      %v1380 = vsel %vm422, %v1218, %v1220
      %v1381 = vsel %vm422, %v1222, %v1224
      %v1382 = vsel %vm422, %v1224, %v1226
      %v1383 = vsel %vm422, %v1228, %v1230
      %v1384 = vsel %vm422, %v1230, %v1232
      %v1385 = vsel %vm422, %v1234, %v1236
      %v1386 = vsel %vm422, %v1236, %v1238
      %v1387 = vsel %vm422, %v1240, %v1242
      %v1388 = vsel %vm422, %v1242, %v1244
      %v1389 = vsel %vm422, %v1246, %v1248
      %v1390 = vsel %vm422, %v1248, %v1250
      %v1391 = vsel %vm422, %v1252, %v1254
      %v1392 = vsel %vm422, %v1254, %v1256
      %v1393 = vsel %vm422, %v1258, %v1260
      %v1394 = vsel %vm422, %v1260, %v1262
      %v1395 = vsel %vm422, %v1264, %v1266
      %v1396 = vsel %vm422, %v1266, %v1268
      %v1397 = vsel %vm422, %v1270, %v1272
      %v1398 = vsel %vm422, %v1272, %v1274
      %v1399 = vsel %vm422, %v1276, %v1278
      %v1400 = vsel %vm422, %v1278, %v1280
      %v1401 = vsel %vm422, %v1282, %v1284
      %v1402 = vsel %vm422, %v1284, %v1286
      %v1403 = vsel %vm422, %v1288, %v1290
      %v1404 = vsel %vm422, %v1290, %v1292
      %v1405 = vsel %vm422, %v1294, %v1296
      %v1406 = vsel %vm422, %v1296, %v1298
      %v1407 = vsel %vm422, %v1300, %v1302
      %v1408 = vsel %vm422, %v1302, %v1304
      %v1409 = vsel %vm422, %v1306, %v1308
      %v1410 = vsel %vm422, %v1308, %v1310
      %v1411 = vsel %vm422, %v1312, %v1314
      %v1412 = vsel %vm422, %v1314, %v1316
      %v1413 = vsel %vm422, %v1318, %v1320
      %v1414 = vsel %vm422, %v1320, %v1322
      %v1415 = vsel %vm422, %v1324, %v1326
      %v1416 = vsel %vm422, %v1326, %v1328
      %v1417 = vsel %vm422, %v1330, %v1332
      %v1418 = vsel %vm422, %v1332, %v1334
      %v1419 = vsel %vm422, %v1336, %v1338
      %v1420 = vsel %vm422, %v1338, %v1340
      %v1421 = vsel %vm422, %v1342, %v1344
      %v1422 = vsel %vm422, %v1344, %v1346
      %v1423 = vsel %vm422, %v1348, %v1350
      %v1424 = vsel %vm422, %v1350, %v1352
      %v1425 = vsel %vm422, %v1354, %v1356
      %v1426 = vsel %vm422, %v1356, %v1358
      %vm1495 = vcmask 523264
      %v1497 = vsel %vm1495, %v1147, 0
      %1499 = vmatprep.subr.bf16.mxu0 %v1360
      %1500 = vmatpush1.bf16.msra.mxu0 %v1359
      %1501 = vmatprep.subr.bf16.mxu0 %v1362
      %1502 = vmatpush1.bf16.msra.mxu0 %v1361
      %1503 = vmatprep.subr.bf16.mxu0 %v1364
      %1504 = vmatpush1.bf16.msra.mxu0 %v1363
      %1505 = vmatprep.subr.bf16.mxu0 %v1366
      %1506 = vmatpush1.bf16.msra.mxu0 %v1365
      %1507 = vmatprep.subr.bf16.mxu0 %v1368
      %1508 = vmatpush1.bf16.msra.mxu0 %v1367
      %1509 = vmatprep.subr.bf16.mxu0 %v1370
      %1510 = vmatpush1.bf16.msra.mxu0 %v1369
      %1511 = vmatprep.subr.bf16.mxu0 %v1372
      %1512 = vmatpush1.bf16.msra.mxu0 %v1371
      %1513 = vmatprep.subr.bf16.mxu0 %v1374
      %1514 = vmatpush1.bf16.msra.mxu0 %v1373
      %1515 = vmatprep.subr.bf16.mxu0 %v1376
      %1516 = vmatpush1.bf16.msra.mxu0 %v1375
      %1517 = vmatprep.subr.bf16.mxu0 %v1378
      %1518 = vmatpush1.bf16.msra.mxu0 %v1377
      %1519 = vmatprep.subr.bf16.mxu0 %v1380
      %1520 = vmatpush1.bf16.msra.mxu0 %v1379
      %1521 = vmatprep.subr.bf16.mxu0 %v1382
      %1522 = vmatpush1.bf16.msra.mxu0 %v1381
      %1523 = vmatprep.subr.bf16.mxu0 %v1384
      %1524 = vmatpush1.bf16.msra.mxu0 %v1383
      %1525 = vmatprep.subr.bf16.mxu0 %v1368
      %1526 = vmatpush1.bf16.msra.mxu0 %v1367
      %1527 = vmatprep.subr.bf16.mxu0 %v1386
      %1528 = vmatpush1.bf16.msra.mxu0 %v1385
      %1529 = vmatprep.subr.bf16.mxu0 %v1388
      %1530 = vmatpush1.bf16.msra.mxu0 %v1387
      %1531 = vmatprep.mubr.bf16.mxu0 %v1144
      %1532 = vmatmul.mubr.bf16.gmra.mrb[0].mxu0 %v1143
      %v1533 = vpop.f32.mrb[0].mxu0
      %v1534 = vadd.f32 %v1133, %v1533
      %v1535 = vpop.f32.mrb[0].mxu0
      %v1536 = vadd.f32 %v1133, %v1535
      %v1537 = vpop.f32.mrb[0].mxu0
      %v1538 = vpop.f32.mrb[0].mxu0
      %1539 = vdwg.mxu0
      %1540 = vmatprep.subr.bf16.mxu0 %v1390
      %1541 = vmatpush1.bf16.msra.mxu0 %v1389
      %1542 = vmatprep.subr.bf16.mxu0 %v1392
      %1543 = vmatpush1.bf16.msra.mxu0 %v1391
      %1544 = vmatprep.subr.bf16.mxu0 %v1394
      %1545 = vmatpush1.bf16.msra.mxu0 %v1393
      %1546 = vmatprep.subr.bf16.mxu0 %v1396
      %1547 = vmatpush1.bf16.msra.mxu0 %v1395
      %1548 = vmatprep.subr.bf16.mxu0 %v1398
      %1549 = vmatpush1.bf16.msra.mxu0 %v1397
      %1550 = vmatprep.subr.bf16.mxu0 %v1400
      %1551 = vmatpush1.bf16.msra.mxu0 %v1399
      %1552 = vmatprep.subr.bf16.mxu0 %v1402
      %1553 = vmatpush1.bf16.msra.mxu0 %v1401
      %1554 = vmatprep.subr.bf16.mxu0 %v1404
      %1555 = vmatpush1.bf16.msra.mxu0 %v1403
      %1556 = vmatprep.subr.bf16.mxu0 %v1406
      %1557 = vmatpush1.bf16.msra.mxu0 %v1405
      %1558 = vmatprep.subr.bf16.mxu0 %v1408
      %1559 = vmatpush1.bf16.msra.mxu0 %v1407
      %1560 = vmatprep.subr.bf16.mxu0 %v1410
      %1561 = vmatpush1.bf16.msra.mxu0 %v1409
      %1562 = vmatprep.subr.bf16.mxu0 %v1412
      %1563 = vmatpush1.bf16.msra.mxu0 %v1411
      %1564 = vmatprep.subr.bf16.mxu0 %v1414
      %1565 = vmatpush1.bf16.msra.mxu0 %v1413
      %1566 = vmatprep.subr.bf16.mxu0 %v1416
      %1567 = vmatpush1.bf16.msra.mxu0 %v1415
      %1568 = vmatprep.subr.bf16.mxu0 %v1418
      %1569 = vmatpush1.bf16.msra.mxu0 %v1417
      %1570 = vmatprep.subr.bf16.mxu0 %v1402
      %1571 = vmatpush1.bf16.msra.mxu0 %v1401
      %1572 = vmatprep.mubr.bf16.mxu0 %v1146
      %1573 = vmatmul.mubr.bf16.gmra.mrb[0].mxu0 %v1145
      %v1574 = vpop.f32.mrb[0].mxu0
      %v1575 = vadd.f32 %v1534, %v1574
      %v1576 = vpop.f32.mrb[0].mxu0
      %v1577 = vadd.f32 %v1536, %v1576
      %v1578 = vpop.f32.mrb[0].mxu0
      %v1579 = vpop.f32.mrb[0].mxu0
      %1580 = vdwg.mxu0
      %1581 = vmatprep.subr.bf16.mxu0 %v1420
      %1582 = vmatpush1.bf16.msra.mxu0 %v1419
      %1583 = vmatprep.subr.bf16.mxu0 %v1422
      %1584 = vmatpush1.bf16.msra.mxu0 %v1421
      %1585 = vmatprep.subr.bf16.mxu0 %v1424
      %1586 = vmatpush1.bf16.msra.mxu0 %v1423
      %1587 = vmatprep.subr.bf16.mxu0 %v1426
      %1588 = vmatpush1.bf16.msra.mxu0 %v1425
      %1589 = vmatprep.subr.bf16.mxu0 0
      %1590 = vmatpush1.bf16.msra.mxu0 0
      %1591 = vmatprep.subr.bf16.mxu0 0
      %1592 = vmatpush1.bf16.msra.mxu0 0
      %1593 = vmatprep.subr.bf16.mxu0 0
      %1594 = vmatpush1.bf16.msra.mxu0 0
      %1595 = vmatprep.subr.bf16.mxu0 0
      %1596 = vmatpush1.bf16.msra.mxu0 0
      %1597 = vmatprep.subr.bf16.mxu0 0
      %1598 = vmatpush1.bf16.msra.mxu0 0
      %1599 = vmatprep.subr.bf16.mxu0 0
      %1600 = vmatpush1.bf16.msra.mxu0 0
      %1601 = vmatprep.subr.bf16.mxu0 0
      %1602 = vmatpush1.bf16.msra.mxu0 0
      %1603 = vmatprep.subr.bf16.mxu0 0
      %1604 = vmatpush1.bf16.msra.mxu0 0
      %1605 = vmatprep.subr.bf16.mxu0 0
      %1606 = vmatpush1.bf16.msra.mxu0 0
      %1607 = vmatprep.subr.bf16.mxu0 0
      %1608 = vmatpush1.bf16.msra.mxu0 0
      %1609 = vmatprep.subr.bf16.mxu0 0
      %1610 = vmatpush1.bf16.msra.mxu0 0
      %1611 = vmatprep.subr.bf16.mxu0 0
      %1612 = vmatpush1.bf16.msra.mxu0 0
      %1613 = vmatprep.mubr.bf16.mxu0 0
      %1614 = vmatmul.mubr.bf16.gmra.mrb[0].mxu0 %v1497
      %v1615 = vpop.f32.mrb[0].mxu0
      %v1616 = vadd.f32 %v1575, %v1615
      %v1617 = vpop.f32.mrb[0].mxu0
      %v1618 = vadd.f32 %v1577, %v1617
      %v1619 = vpop.f32.mrb[0].mxu0
      %v1620 = vpop.f32.mrb[0].mxu0
      %1621 = vdwg.mxu0
      %v1622 = vmax.f32 %v1616, 0.0
      %v1623 = vmax.f32 %v1618, 0.0
      %1624 = vst [vmem:[%s192] sm:$0xff] %v1622
      %1625 = vst [vmem:[%s192 + $0x8] sm:$0xff] %v1623
      %s1626 = smul.u32 2, %s19
      %p1627 = scmp.lt.s32.totalorder %s18, 1
      %s1628 = scalar_select %p1627, %s18, 1
      %p1629 = scmp.lt.s32.totalorder %s1626, 1
      %s1630 = scalar_select %p1629, %s1626, 1
      %s1631 = smul.addr %s1628, 2
      %s1632 = sadd.s32 %s1630, %s1631
      %s1633 = smul.addr %s1632, 8
      %s1634 = scalar_lea.vmem %s3, %s1633
      // Predicated region
      $region37: #{aspp_pallas.1} parent=31 // pred_check
        %p1635 = pneg %p114
      $region38: #{aspp_pallas.1} parent=31 // pred_check_branch
        %1637 = sbr.rel (%p1635) target = $region40
      $region39: #{aspp_pallas.1} parent=31 // pred_region
        %s1638 = smul.u32 2, %s19
      $region40: #{aspp_pallas.1} parent=31 // pred_fallthru
        _
    $region32: #{aspp_pallas.1} parent=5 // pred_fallthru
      _
    %p1639 = scmp.le.s32.totalorder 2, %s9
    // Predicated region
    $region41: #{aspp_pallas.1} parent=5 // pred_check
      %p1640 = pneg %p1639
    $region42: #{aspp_pallas.1} parent=5 // pred_check_branch
      %1642 = sbr.rel (%p1640) target = $region44
    $region43: #{aspp_pallas.1} parent=5 // pred_region
      %s1643 = ssub.s32 %s9, 2
      // Predicated region
      $region45: #{aspp_pallas.1} parent=43 // pred_check
        %p1644 = pneg %p120
      $region46: #{aspp_pallas.1} parent=43 // pred_check_branch
        %1646 = sbr.rel (%p1644) target = $region48
      $region47: #{aspp_pallas.1} parent=43 // pred_region
        %s1647 = smul.u32 2, %s21
        %p1648 = scmp.lt.s32.totalorder %s20, 1
        %s1649 = scalar_select %p1648, %s20, 1
        %p1650 = scmp.lt.s32.totalorder %s1647, 1
        %s1651 = scalar_select %p1650, %s1647, 1
        %s1652 = smul.addr %s1649, 2
        %s1653 = sadd.s32 %s1651, %s1652
        %s1654 = smul.addr %s1653, 8
        %s1655 = scalar_lea.vmem %s3, %s1654
      $region48: #{aspp_pallas.1} parent=43 // pred_fallthru
        _
    $region44: #{aspp_pallas.1} parent=5 // pred_fallthru
      _
  $region6: #{aspp_pallas.1} parent=0 // loop_footer
    %s13 = sadd.s32 1, %s9
  $region7: #{aspp_pallas.1} parent=0 // loop_footer_branch
    %8 = sbr.rel target = $region3
  $region8: #{aspp_pallas.1} parent=0 // loop_exit
    _

</llo_original>
